<compile_context>
chip_gen: v5e
topology: v5e:2x2
jax: 0.10.0
libtpu: 0.0.40
codegen_flags: <defaults>
</compile_context>

<pallas_src>
import functools

import jax
import jax.numpy as jnp
from jax.experimental import pallas as pl
from jax.experimental.pallas import tpu as pltpu

_PI_OVER_2 = 1.5707963267948966


def _rope_fused_kernel(inv2_ref, phase_ref, cos_ref, sin_ref, *, ratio, seq_tile, dim):
    # inv2_ref:  (1, 2*dim)  = [inv_dup | inv_dup]
    # phase_ref: (1, 2*dim)  = [pi/2 ... | 0 ...]
    # cos_ref/sin_ref: (seq_tile, dim)
    i = pl.program_id(0)
    width = 2 * dim
    pos = jax.lax.broadcasted_iota(jnp.int32, (seq_tile, width), 0).astype(jnp.float32)
    t = (pos + (i * seq_tile).astype(jnp.float32)) / jnp.float32(ratio)
    fused = jnp.sin(t * inv2_ref[...] + phase_ref[...])   # [cos(freqs_dup) | sin(freqs_dup)]
    cos_ref[...] = fused[:, :dim].astype(cos_ref.dtype)
    sin_ref[...] = fused[:, dim:].astype(sin_ref.dtype)


def _rope_half_kernel(inv_ref, cos_ref, sin_ref, *, ratio, seq_tile, half):
    # inv_ref: (1, half) with half >= 128 (lane-dense); outputs (seq_tile, 2*half).
    i = pl.program_id(0)
    pos = jax.lax.broadcasted_iota(jnp.int32, (seq_tile, half), 0).astype(jnp.float32)
    t = (pos + (i * seq_tile).astype(jnp.float32)) / jnp.float32(ratio)
    freqs = t * inv_ref[...]
    c = jnp.cos(freqs).astype(cos_ref.dtype)
    s = jnp.sin(freqs).astype(sin_ref.dtype)
    # emb = concat([freqs, freqs]) -> duplicate halves via direct slice stores.
    cos_ref[:, :half] = c
    cos_ref[:, half:] = c
    sin_ref[:, :half] = s
    sin_ref[:, half:] = s


def condense_rotary_embedding(x, seq_len, *, dim, ratio, base=10000.0,
                              max_seq_tile=8192):
    """Returns (cos, sin), each of shape (1, 1, seq_len, dim), dtype = x.dtype."""
    out_dtype = x.dtype
    half = dim // 2

    # Same f32 pow-based computation as the PyTorch buffer setup.
    inv_freq = 1.0 / (base ** (jnp.arange(0, dim, 2, dtype=jnp.float32) / dim))
    half_mode = half >= 128   # exploit duplicated-freqs symmetry only when lane-dense

    # --- Tile selection ------------------------------------------------------
    # ~4 MiB per output pipeline buffer (2 outputs x 2 buffers ~= 16 MiB), capped
    # at max_seq_tile; additionally keep grid >= 2 so both v7x TCs get work.
    itemsize = jnp.dtype(out_dtype).itemsize
    per_out_buffer_budget = 4 * 1024 * 1024
    cap = (per_out_buffer_budget // (dim * itemsize)) // 8 * 8
    cap = max(8, min(int(max_seq_tile), int(cap)))
    if seq_len > 8:
        target = ((pl.cdiv(seq_len, 2) + 7) // 8) * 8     # ~half the rows, mult of 8
    else:
        target = 8
    seq_tile = max(8, min(cap, target))
    grid = (pl.cdiv(seq_len, seq_tile),)   # last block clipped if it overhangs

    out_shape = (jax.ShapeDtypeStruct((1, 1, seq_len, dim), out_dtype),
                 jax.ShapeDtypeStruct((1, 1, seq_len, dim), out_dtype))
    out_specs = (pl.BlockSpec((None, None, seq_tile, dim), lambda i: (0, 0, i, 0)),
                 pl.BlockSpec((None, None, seq_tile, dim), lambda i: (0, 0, i, 0)))

    if half_mode:
        kernel = functools.partial(_rope_half_kernel, ratio=float(ratio),
                                   seq_tile=seq_tile, half=half)
        in_specs = [pl.BlockSpec((1, half), lambda i: (0, 0))]
        args = (inv_freq.reshape(1, half),)
    else:
        inv_dup = jnp.concatenate([inv_freq, inv_freq], axis=0)          # (dim,)
        inv2 = jnp.concatenate([inv_dup, inv_dup], axis=0).reshape(1, 2 * dim)
        phase = jnp.concatenate(
            [jnp.full((dim,), _PI_OVER_2, dtype=jnp.float32),
             jnp.zeros((dim,), dtype=jnp.float32)], axis=0).reshape(1, 2 * dim)
        kernel = functools.partial(_rope_fused_kernel, ratio=float(ratio),
                                   seq_tile=seq_tile, dim=dim)
        in_specs = [pl.BlockSpec((1, 2 * dim), lambda i: (0, 0)),
                    pl.BlockSpec((1, 2 * dim), lambda i: (0, 0))]
        args = (inv2, phase)

    cos, sin = pl.pallas_call(
        kernel,
        out_shape=out_shape,
        grid_spec=pltpu.PrefetchScalarGridSpec(
            num_scalar_prefetch=0,
            grid=grid,
            in_specs=in_specs,
            out_specs=out_specs,
        ),
        compiler_params=pltpu.CompilerParams(
            dimension_semantics=("parallel",),
            vmem_limit_bytes=40 * 1024 * 1024,
        ),
    )(*args)
    return cos, sin


def _reference(x, seq_len, *, dim, ratio, base=10000.0):
    inv_freq = 1.0 / (base ** (jnp.arange(0, dim, 2, dtype=jnp.float32) / dim))
    t = jnp.arange(seq_len, dtype=jnp.float32) / ratio
    freqs = jnp.einsum("i,j->ij", t, inv_freq)
    emb = jnp.concatenate([freqs, freqs], axis=-1)
    cos = jnp.cos(emb)[None, None, :, :].astype(x.dtype)
    sin = jnp.sin(emb)[None, None, :, :].astype(x.dtype)
    return cos, sin


def _check(key, *, batch, heads, seq_len, dim, ratio, max_seq_tile=8192, atol=1e-5):
    # x only contributes its dtype (and device) to the forward pass.
    x = jax.random.normal(key, (batch, heads, seq_len, dim), dtype=jnp.float32)
    cos, sin = condense_rotary_embedding(
        x, seq_len, dim=dim, ratio=ratio, max_seq_tile=max_seq_tile)
    cos = jax.block_until_ready(cos)
    sin = jax.block_until_ready(sin)

    cos_ref, sin_ref = _reference(x, seq_len, dim=dim, ratio=ratio)
    assert cos.shape == (1, 1, seq_len, dim) and sin.shape == (1, 1, seq_len, dim)
    assert cos.dtype == x.dtype and sin.dtype == x.dtype
    assert jnp.allclose(cos, cos_ref, atol=atol, rtol=1e-5)
    assert jnp.allclose(sin, sin_ref, atol=atol, rtol=1e-5)


if __name__ == "__main__":
    key = jax.random.PRNGKey(0)

    # Primary small config (head_dim=64 rotary; fused sin(x+phase) path, grid=2).
    _check(key, batch=2, heads=4, seq_len=128, dim=64, ratio=4)

    # Non-divisible grid: cdiv grid with a clipped last output block.
    _check(key, batch=2, heads=4, seq_len=192, dim=64, ratio=8, max_seq_tile=128)

    # dim/2 >= 128 path: half-width cos/sin computed once, direct slice stores.
    _check(key, batch=1, heads=2, seq_len=128, dim=256, ratio=4)

    print("KERNEL_OK")
</pallas_src>

<mosaic_0001>
module attributes {stable_mosaic.version = 11 : i64} {
  func.func @_rope_fused_kernel(%arg0: i32, %arg1: memref<1x128xf32, #tpu.memory_space<vmem>>, %arg2: memref<1x128xf32, #tpu.memory_space<vmem>>, %arg3: memref<1x1x64x64xf32, #tpu.memory_space<vmem>>, %arg4: memref<1x1x64x64xf32, #tpu.memory_space<vmem>>) attributes {dimension_semantics = [#tpu.dimension_semantics<parallel>], iteration_bounds = array<i64: 2>, scalar_prefetch = 0 : i64, scratch_operands = 0 : i64, tpu.core_type = #tpu.core_type<tc>, window_params = [{pipeline_mode = #tpu.pipeline_mode<synchronous>, transform_indices = @transform_0, window_bounds = array<i64: 1, 128>}, {pipeline_mode = #tpu.pipeline_mode<synchronous>, transform_indices = @transform_1, window_bounds = array<i64: 1, 128>}, {transform_indices = @transform_2, window_bounds = array<i64: 1, 1, 64, 64>}, {transform_indices = @transform_3, window_bounds = array<i64: 1, 1, 64, 64>}]} {
    %0 = tpu.iota {dimensions = array<i32: 0>} : vector<64x128xi32>
    %1 = arith.sitofp %0 : vector<64x128xi32> to vector<64x128xf32>
    %c64_i32 = arith.constant 64 : i32
    %2 = arith.muli %arg0, %c64_i32 : i32
    %3 = arith.sitofp %2 : i32 to f32
    %4 = vector.broadcast %3 : f32 to vector<64x128xf32>
    %5 = arith.addf %1, %4 : vector<64x128xf32>
    %cst = arith.constant 4.000000e+00 : f32
    %6 = vector.broadcast %cst : f32 to vector<64x128xf32>
    %7 = arith.divf %5, %6 : vector<64x128xf32>
    %c0 = arith.constant 0 : index
    %c0_0 = arith.constant 0 : index
    %8 = vector.load %arg1[%c0, %c0_0] : memref<1x128xf32, #tpu.memory_space<vmem>>, vector<1x128xf32>
    %9 = vector.broadcast %8 : vector<1x128xf32> to vector<64x128xf32>
    %10 = arith.mulf %7, %9 : vector<64x128xf32>
    %c0_1 = arith.constant 0 : index
    %c0_2 = arith.constant 0 : index
    %11 = vector.load %arg2[%c0_1, %c0_2] : memref<1x128xf32, #tpu.memory_space<vmem>>, vector<1x128xf32>
    %12 = vector.broadcast %11 : vector<1x128xf32> to vector<64x128xf32>
    %13 = arith.addf %10, %12 : vector<64x128xf32>
    %14 = math.sin %13 : vector<64x128xf32>
    %15 = vector.extract_strided_slice %14 {offsets = [0, 0], sizes = [64, 64], strides = [1, 1]} : vector<64x128xf32> to vector<64x64xf32>
    %c0_3 = arith.constant 0 : index
    %c0_4 = arith.constant 0 : index
    %c0_5 = arith.constant 0 : index
    %c0_6 = arith.constant 0 : index
    %16 = vector.load %arg3[%c0_3, %c0_4, %c0_5, %c0_6] : memref<1x1x64x64xf32, #tpu.memory_space<vmem>>, vector<1x1x64x64xf32>
    %17 = vector.shape_cast %16 : vector<1x1x64x64xf32> to vector<64x64xf32>
    %18 = vector.shape_cast %15 : vector<64x64xf32> to vector<1x1x64x64xf32>
    tpu.vector_store %arg3[%c0_3, %c0_4, %c0_5, %c0_6], %18 {strides = array<i32>} : memref<1x1x64x64xf32, #tpu.memory_space<vmem>>, vector<1x1x64x64xf32>,
    %19 = vector.extract_strided_slice %14 {offsets = [0, 64], sizes = [64, 64], strides = [1, 1]} : vector<64x128xf32> to vector<64x64xf32>
    %c0_7 = arith.constant 0 : index
    %c0_8 = arith.constant 0 : index
    %c0_9 = arith.constant 0 : index
    %c0_10 = arith.constant 0 : index
    %20 = vector.load %arg4[%c0_7, %c0_8, %c0_9, %c0_10] : memref<1x1x64x64xf32, #tpu.memory_space<vmem>>, vector<1x1x64x64xf32>
    %21 = vector.shape_cast %20 : vector<1x1x64x64xf32> to vector<64x64xf32>
    %22 = vector.shape_cast %19 : vector<64x64xf32> to vector<1x1x64x64xf32>
    tpu.vector_store %arg4[%c0_7, %c0_8, %c0_9, %c0_10], %22 {strides = array<i32>} : memref<1x1x64x64xf32, #tpu.memory_space<vmem>>, vector<1x1x64x64xf32>,
    return
  }
  func.func @transform_0(%arg0: i32) -> (i32, i32) {
    %c0_i32 = arith.constant 0 : i32
    %c0_i32_0 = arith.constant 0 : i32
    %c0_i32_1 = arith.constant 0 : i32
    return %c0_i32, %c0_i32_0 : i32, i32
  }
  func.func @transform_1(%arg0: i32) -> (i32, i32) {
    %c0_i32 = arith.constant 0 : i32
    %c0_i32_0 = arith.constant 0 : i32
    %c0_i32_1 = arith.constant 0 : i32
    return %c0_i32, %c0_i32_0 : i32, i32
  }
  func.func @transform_2(%arg0: i32) -> (i32, i32, i32, i32) {
    %c0_i32 = arith.constant 0 : i32
    %c0_i32_0 = arith.constant 0 : i32
    %c0_i32_1 = arith.constant 0 : i32
    %c0_i32_2 = arith.constant 0 : i32
    return %c0_i32, %c0_i32_0, %arg0, %c0_i32_1 : i32, i32, i32, i32
  }
  func.func @transform_3(%arg0: i32) -> (i32, i32, i32, i32) {
    %c0_i32 = arith.constant 0 : i32
    %c0_i32_0 = arith.constant 0 : i32
    %c0_i32_1 = arith.constant 0 : i32
    %c0_i32_2 = arith.constant 0 : i32
    return %c0_i32, %c0_i32_0, %arg0, %c0_i32_1 : i32, i32, i32, i32
  }
}

</mosaic_0001>

<llo_original>
// kernel: tpu_custom_call.1
$region0: #{tpu_custom_call.1}
  #allocation0 [shape = 'u32[]', space=smem, size = 0x4, offset = 0x4, fixed_abs, tag = 'smem constant byte address 0x4 - core index']
  #allocation1 [shape = 'u32[72,128]{1,0:T(1,128)}', space=vmem, size = 0x9000, scoped, tag = 'internal scratch']
  %s0 = inlined_call_operand.hbm [shape: f32[1,128], index: 0, kind: input, shape index: {}]
  %s1 = inlined_call_operand.hbm [shape: f32[1,128], index: 1, kind: input, shape index: {}]
  %s2 = inlined_call_operand.vmem [shape: f32[1,1,128,64], index: 2, kind: output, shape index: {0}]
  %s3 = inlined_call_operand.vmem [shape: f32[1,1,128,64], index: 3, kind: output, shape index: {1}]
  %4 = xla_tuple %s2, %s3
  %s5 = sld [smem:[#allocation0]]
  $region57: #{tpu_custom_call.1} parent=0
    _
  %s7 = ssub.s32 1, %s5
  %s8 = scalar_select 0, %s7, %s5
  $region1: #{tpu_custom_call.1} parent=0
    #allocation2 [shape = 'u8[512]{0}', space=vmem, size = 0x400, scoped, tag = 'input window, operand 0, single buffered']
    #allocation3 [shape = 's32[2]{0}', space=sflag, size = 0x8, scoped, tag = 'scoped memory for tpu_custom_call.1']
    #allocation4 [shape = 'u8[512]{0}', space=vmem, size = 0x400, scoped, tag = 'input window, operand 1, single buffered']
    #allocation5 [shape = 's32[1]{0}', space=sflag, size = 0x4, scoped, tag = 'scoped memory for tpu_custom_call.1']
    %9 = vsyncpa [#allocation3], 0
    %10 = vsyncpa [#allocation5], 0
    loop: start=0, step=1, limit=4
    $region2: #{tpu_custom_call.1} parent=1 // loop_pre_header
      _
    $region3: #{tpu_custom_call.1} parent=1 // loop_header
      %s12 = sphi 0, %s16
      %p13 = scmp.ge.s32.totalorder %s12, 4
      %s20 = sphi 0, %s20
      %s22 = sphi 0, %s20
      %s23 = sphi 0, %s22
      %s37 = sphi 0, %s23
      %s41 = sphi 0, %s41
      %s43 = sphi 0, %s41
      %s44 = sphi 0, %s43
      %s58 = sphi 0, %s44
      %s64 = sphi 0, %s66
      %s67 = sphi 0, %s64
      %s68 = sphi 0, %s67
      %s84 = sphi 0, %s68
      %s90 = sphi 0, %s92
      %s93 = sphi 0, %s90
      %s94 = sphi 0, %s93
      %s110 = sphi 0, %s94
    $region4: #{tpu_custom_call.1} parent=1 // loop_header_branch
      %15 = sbr.rel (%p13) target = $region8
    $region5: #{tpu_custom_call.1} parent=1 // loop_body
      %s17 = ssub.s32 %s12, 1
      %s18 = ssub.s32 %s12, 2
      %s19 = sadd.s32 %s12, 1
      %s21 = sadd.s32 %s20, 1
      %p24 = scmp.eq.s32.totalorder %s12, 1
      %p25 = scmp.ne.s32.totalorder %s20, %s22
      %p26 = scmp.eq.s32.totalorder %s12, 0
      %p27 = por %p25, %p26
      %p28 = scmp.ne.s32.totalorder %s20, %s22
      %p29 = scmp.eq.s32.totalorder %s17, 1
      %p30 = por %p28, %p29
      %p31 = scmp.ne.s32.totalorder %s22, %s23
      %p32 = scmp.eq.s32.totalorder %s17, 0
      %p33 = por %p31, %p32
      %p34 = scmp.ne.s32.totalorder %s22, %s23
      %p35 = scmp.eq.s32.totalorder %s18, 1
      %p36 = por %p34, %p35
      %p38 = scmp.ne.s32.totalorder %s23, %s37
      %p39 = scmp.eq.s32.totalorder %s18, 0
      %p40 = por %p38, %p39
      %s42 = sadd.s32 %s41, 1
      %p45 = scmp.eq.s32.totalorder %s12, 1
      %p46 = scmp.ne.s32.totalorder %s41, %s43
      %p47 = scmp.eq.s32.totalorder %s12, 0
      %p48 = por %p46, %p47
      %p49 = scmp.ne.s32.totalorder %s41, %s43
      %p50 = scmp.eq.s32.totalorder %s17, 1
      %p51 = por %p49, %p50
      %p52 = scmp.ne.s32.totalorder %s43, %s44
      %p53 = scmp.eq.s32.totalorder %s17, 0
      %p54 = por %p52, %p53
      %p55 = scmp.ne.s32.totalorder %s43, %s44
      %p56 = scmp.eq.s32.totalorder %s18, 1
      %p57 = por %p55, %p56
      %p59 = scmp.ne.s32.totalorder %s44, %s58
      %p60 = scmp.eq.s32.totalorder %s18, 0
      %p61 = por %p59, %p60
      %s62 = ssub.s32 %s12, %s19
      %p63 = scmp.eq.s32.totalorder %s62, 0
      %s65 = sadd.s32 %s64, 1
      %s66 = scalar_select %p63, %s64, %s65
      %p69 = pneg %p63
      %p70 = scmp.eq.s32.totalorder %s12, 1
      %p71 = por %p69, %p70
      %p72 = scmp.ne.s32.totalorder %s64, %s67
      %p73 = scmp.eq.s32.totalorder %s12, 0
      %p74 = por %p72, %p73
      %p75 = scmp.ne.s32.totalorder %s64, %s67
      %p76 = scmp.eq.s32.totalorder %s17, 1
      %p77 = por %p75, %p76
      %p78 = scmp.ne.s32.totalorder %s67, %s68
      %p79 = scmp.eq.s32.totalorder %s17, 0
      %p80 = por %p78, %p79
      %p81 = scmp.ne.s32.totalorder %s67, %s68
      %p82 = scmp.eq.s32.totalorder %s18, 1
      %p83 = por %p81, %p82
      %p85 = scmp.ne.s32.totalorder %s68, %s84
      %p86 = scmp.eq.s32.totalorder %s18, 0
      %p87 = por %p85, %p86
      %s88 = ssub.s32 %s12, %s19
      %p89 = scmp.eq.s32.totalorder %s88, 0
      %s91 = sadd.s32 %s90, 1
      %s92 = scalar_select %p89, %s90, %s91
      %p95 = pneg %p89
      %p96 = scmp.eq.s32.totalorder %s12, 1
      %p97 = por %p95, %p96
      %p98 = scmp.ne.s32.totalorder %s90, %s93
      %p99 = scmp.eq.s32.totalorder %s12, 0
      %p100 = por %p98, %p99
      %p101 = scmp.ne.s32.totalorder %s90, %s93
      %p102 = scmp.eq.s32.totalorder %s17, 1
      %p103 = por %p101, %p102
      %p104 = scmp.ne.s32.totalorder %s93, %s94
      %p105 = scmp.eq.s32.totalorder %s17, 0
      %p106 = por %p104, %p105
      %p107 = scmp.ne.s32.totalorder %s93, %s94
      %p108 = scmp.eq.s32.totalorder %s18, 1
      %p109 = por %p107, %p108
      %p111 = scmp.ne.s32.totalorder %s94, %s110
      %p112 = scmp.eq.s32.totalorder %s18, 0
      %p113 = por %p111, %p112
      %p114 = scmp.le.s32.totalorder 1, %s12
      %p115 = scmp.lt.s32.totalorder %s12, 3
      %p116 = pnand %p114, %p115
      %p117 = pneg %p116
      // Predicated region
      $region9: #{tpu_custom_call.1} parent=5 // pred_check
        _
      $region10: #{tpu_custom_call.1} parent=5 // pred_check_branch
        %119 = sbr.rel (%p116) target = $region12
      $region11: #{tpu_custom_call.1} parent=5 // pred_region
        %s120 = ssub.s32 %s12, 1
        // Predicated region
        $region13: #{tpu_custom_call.1} parent=11 // pred_check
          %p121 = pneg %p33
        $region14: #{tpu_custom_call.1} parent=11 // pred_check_branch
          %123 = sbr.rel (%p121) target = $region16
        $region15: #{tpu_custom_call.1} parent=11 // pred_region
          %125 = vsyncadd [#allocation3], 0
          %s127 = sshll.u32 %s0, 4
          %s128 = int_to_ptr.hbm [resolvable:$true] %s127
          %s129 = sshll.u32 [#allocation2], 4
          %s130 = int_to_ptr.vmem [resolvable:$true] %s129
          %132 = dma.hbm_to_vmem [thread:$0]  %s128, 16, %s130, [#allocation3]
        $region16: #{tpu_custom_call.1} parent=11 // pred_fallthru
          _
        // Predicated region
        $region17: #{tpu_custom_call.1} parent=11 // pred_check
          %p133 = pneg %p54
        $region18: #{tpu_custom_call.1} parent=11 // pred_check_branch
          %135 = sbr.rel (%p133) target = $region20
        $region19: #{tpu_custom_call.1} parent=11 // pred_region
          %137 = vsyncadd [#allocation5], 0
          %s139 = sshll.u32 %s1, 4
          %s140 = int_to_ptr.hbm [resolvable:$true] %s139
          %s141 = sshll.u32 [#allocation4], 4
          %s142 = int_to_ptr.vmem [resolvable:$true] %s141
          %144 = dma.hbm_to_vmem [thread:$0]  %s140, 16, %s142, [#allocation5]
        $region20: #{tpu_custom_call.1} parent=11 // pred_fallthru
          _
      $region12: #{tpu_custom_call.1} parent=5 // pred_fallthru
        _
      %p145 = scmp.lt.s32.totalorder %s12, 2
      // Predicated region
      $region21: #{tpu_custom_call.1} parent=5 // pred_check
        %p146 = pneg %p145
      $region22: #{tpu_custom_call.1} parent=5 // pred_check_branch
        %148 = sbr.rel (%p146) target = $region24
      $region23: #{tpu_custom_call.1} parent=5 // pred_region
        _
      $region24: #{tpu_custom_call.1} parent=5 // pred_fallthru
        _
      %p149 = scmp.le.s32.totalorder 1, %s12
      %p150 = scmp.lt.s32.totalorder %s12, 3
      %p151 = pnand %p149, %p150
      %p152 = pneg %p151
      // Predicated region
      $region25: #{tpu_custom_call.1} parent=5 // pred_check
        _
      $region26: #{tpu_custom_call.1} parent=5 // pred_check_branch
        %154 = sbr.rel (%p151) target = $region28
      $region27: #{tpu_custom_call.1} parent=5 // pred_region
        %s155 = ssub.s32 %s12, 1
        // Predicated region
        $region29: #{tpu_custom_call.1} parent=27 // pred_check
          %p156 = pneg %p33
        $region30: #{tpu_custom_call.1} parent=27 // pred_check_branch
          %158 = sbr.rel (%p156) target = $region32
        $region31: #{tpu_custom_call.1} parent=27 // pred_region
          %160 = dma.done [#allocation3], 16
        $region32: #{tpu_custom_call.1} parent=27 // pred_fallthru
          _
        // Predicated region
        $region33: #{tpu_custom_call.1} parent=27 // pred_check
          %p161 = pneg %p54
        $region34: #{tpu_custom_call.1} parent=27 // pred_check_branch
          %163 = sbr.rel (%p161) target = $region36
        $region35: #{tpu_custom_call.1} parent=27 // pred_region
          %165 = dma.done [#allocation5], 16
        $region36: #{tpu_custom_call.1} parent=27 // pred_fallthru
          _
        %p166 = pneg %p33
        %p167 = pneg %p30
        %p168 = pneg %p54
        %p169 = pneg %p51
        %p170 = pneg %p80
        %p171 = pneg %p77
        %s172 = smul.u32 8, %s17
        %p173 = scmp.lt.s32.totalorder %s172, 15
        %s174 = scalar_select %p173, %s172, 15
        %s175 = smul.addr %s174, 8
        %s176 = scalar_lea.vmem %s2, %s175
        %p177 = pneg %p106
        %p178 = pneg %p103
        %s179 = smul.u32 8, %s17
        %p180 = scmp.lt.s32.totalorder %s179, 15
        %s181 = scalar_select %p180, %s179, 15
        %s182 = smul.addr %s181, 8
        %s183 = scalar_lea.vmem %s3, %s182
        %s184 = smul.u32 8, %s17
        %p185 = scmp.lt.s32.totalorder %s184, 15
        %s186 = scalar_select %p185, %s184, 15
        %s187 = smul.addr %s186, 8
        %s188 = scalar_lea.vmem %s2, %s187
        %s189 = smul.u32 8, %s17
        %s190 = smul.u32 8, %s17
        %p191 = scmp.lt.s32.totalorder %s190, 15
        %s192 = scalar_select %p191, %s190, 15
        %s193 = smul.addr %s192, 8
        %s194 = scalar_lea.vmem %s3, %s193
        %s195 = smul.u32 8, %s17
        %v196 = vlaneseq
        %v197 = vshrl.u32 %v196, 7
        %v198 = vadd.s32 %v197, 8
        %v199 = vadd.s32 %v197, 16
        %v200 = vadd.s32 %v197, 24
        %v201 = vadd.s32 %v197, 32
        %v202 = vadd.s32 %v197, 40
        %v203 = vadd.s32 %v197, 48
        %v204 = vadd.s32 %v197, 56
        %v205 = vcvt.s32.f32 %v197
        %v206 = vcvt.s32.f32 %v198
        %v207 = vcvt.s32.f32 %v199
        %v208 = vcvt.s32.f32 %v200
        %v209 = vcvt.s32.f32 %v201
        %v210 = vcvt.s32.f32 %v202
        %v211 = vcvt.s32.f32 %v203
        %v212 = vcvt.s32.f32 %v204
        %s213 = smul.u32 %s17, 64
        %s214 = scvt.s32.f32 %s213
        %v215 = vstv %s214
        %v216 = vadd.f32 %v205, %v215
        %v217 = vadd.f32 %v206, %v215
        %v218 = vadd.f32 %v207, %v215
        %v219 = vadd.f32 %v208, %v215
        %v220 = vadd.f32 %v209, %v215
        %v221 = vadd.f32 %v210, %v215
        %v222 = vadd.f32 %v211, %v215
        %v223 = vadd.f32 %v212, %v215
        %v224 = vrcp.pop 4.0
        %v225 = vmul.f32 4.0, %v224
        %v226 = vsub.f32 1.0, %v225
        %v227 = vmul.f32 %v224, %v226
        %v228 = vadd.f32 %v224, %v227
        %vm229 = vweird.f32 %v224
        %v230 = vsel %vm229, %v224, %v228
        %v231 = vmul.f32 %v216, %v230
        %v232 = vmul.f32 %v217, %v230
        %v233 = vmul.f32 %v218, %v230
        %v234 = vmul.f32 %v219, %v230
        %v235 = vmul.f32 %v220, %v230
        %v236 = vmul.f32 %v221, %v230
        %v237 = vmul.f32 %v222, %v230
        %v238 = vmul.f32 %v223, %v230
        %v239 = vld [vmem:[#allocation2] sm:$0x1]
        %v241 = vperm.slane %v239, 0
        %v243 = vmul.f32 %v231, %v241
        %v244 = vmul.f32 %v232, %v241
        %v245 = vmul.f32 %v233, %v241
        %v246 = vmul.f32 %v234, %v241
        %v247 = vmul.f32 %v235, %v241
        %v248 = vmul.f32 %v236, %v241
        %v249 = vmul.f32 %v237, %v241
        %v250 = vmul.f32 %v238, %v241
        %v251 = vld [vmem:[#allocation4] sm:$0x1]
        %v253 = vperm.slane %v251, 0
        %v255 = vadd.f32 %v243, %v253
        %v256 = vadd.f32 %v244, %v253
        %v257 = vadd.f32 %v245, %v253
        %v258 = vadd.f32 %v246, %v253
        %v259 = vadd.f32 %v247, %v253
        %v260 = vadd.f32 %v248, %v253
        %v261 = vadd.f32 %v249, %v253
        %v262 = vadd.f32 %v250, %v253
        %v263 = vand.u32 2147483647, %v255
        %vm264 = vcmp.le.f32.partialorder %v263, 0.7853982
        %vm265 = vcmp.lt.s32.totalorder %v255, 0
        %v266 = vand.u32 %v255, 2139095040
        %v267 = vshrl.u32 %v266, 23
        %v268 = vsub.s32 %v267, 127
        %v269 = vand.u32 2147483647, %v255
        %v270 = vand.u32 %v269, 8388607
        %v271 = vor.u32 %v270, 8388608
        %v272 = vsub.s32 0, %v271
        %v273 = vadd.s32 %v268, 1
        %vm274 = vcmp.gt.s32.totalorder %v273, 0
        %v275 = vsel %vm274, %v273, 0
        %v276 = vshrl.u32 %v275, 5
        %v277 = vand.u32 %v275, 31
        %v278 = vsub.s32 32, %v277
        %v279 = vshrl.u32 683565275, %v278
        %v280 = vshll.u32 683565275, %v277
        %v281 = vshrl.u32 2475754826, %v278
        %v282 = vor.u32 %v280, %v281
        %v283 = vshll.u32 2475754826, %v277
        %v284 = vshrl.u32 2131351028, %v278
        %v285 = vor.u32 %v283, %v284
        %v286 = vshll.u32 2131351028, %v277
        %v287 = vshrl.u32 2102212464, %v278
        %v288 = vor.u32 %v286, %v287
        %v289 = vshll.u32 2102212464, %v277
        %v290 = vshrl.u32 920167782, %v278
        %v291 = vor.u32 %v289, %v290
        %v292 = vshll.u32 920167782, %v277
        %v293 = vshrl.u32 1326507024, %v278
        %v294 = vor.u32 %v292, %v293
        %vm295 = vcmp.lt.s32.totalorder %v276, 1
        %vm296 = vcmp.lt.s32.totalorder %v276, 2
        %vm297 = vcmp.lt.s32.totalorder %v276, 3
        %vm298 = vcmp.lt.s32.totalorder %v276, 4
        %v299 = vsel %vm295, %v279, %v282
        %v300 = vsel %vm298, %v288, 2102212464
        %v301 = vsel %vm297, %v285, %v300
        %v302 = vsel %vm296, %v299, %v301
        %v303 = vsel %vm295, %v282, %v285
        %v304 = vsel %vm298, %v291, 920167782
        %v305 = vsel %vm297, %v288, %v304
        %v306 = vsel %vm296, %v303, %v305
        %v307 = vsel %vm295, %v285, %v288
        %v308 = vsel %vm298, %v294, 1326507024
        %v309 = vsel %vm297, %v291, %v308
        %v310 = vsel %vm296, %v307, %v309
        %v311 = vshll.u32 %v271, 8
        %v312 = vand.u32 %v311, 65535
        %v313 = vshrl.u32 %v311, 16
        %v314 = vand.u32 %v310, 65535
        %v315 = vshrl.u32 %v310, 16
        %v316 = vmul.u32 %v312, %v314
        %v317 = vmul.u32 %v312, %v315
        %v318 = vmul.u32 %v313, %v314
        %v319 = vmul.u32 %v313, %v315
        %v320 = vshll.u32 %v317, 16
        %v321 = vshrl.u32 %v317, 16
        %v322 = vshll.u32 %v318, 16
        %v323 = vshrl.u32 %v318, 16
        %vm324 = vc.u32 %v316, %v320
        %v325 = vsel %vm324, 1, 0
        %v326 = vadd.s32 %v316, %v320
        %v327 = vadd.s32 %v319, %v325
        %vm328 = vc.u32 %v326, %v322
        %v329 = vsel %vm328, 1, 0
        %v330 = vadd.s32 %v326, %v322
        %v331 = vadd.s32 %v327, %v329
        %v332 = vadd.s32 %v331, %v321
        %v333 = vadd.s32 %v332, %v323
        %v334 = vand.u32 %v311, 65535
        %v335 = vshrl.u32 %v311, 16
        %v336 = vand.u32 %v306, 65535
        %v337 = vshrl.u32 %v306, 16
        %v338 = vmul.u32 %v334, %v336
        %v339 = vmul.u32 %v334, %v337
        %v340 = vmul.u32 %v335, %v336
        %v341 = vmul.u32 %v335, %v337
        %v342 = vshll.u32 %v339, 16
        %v343 = vshrl.u32 %v339, 16
        %v344 = vshll.u32 %v340, 16
        %v345 = vshrl.u32 %v340, 16
        %vm346 = vc.u32 %v338, %v342
        %v347 = vsel %vm346, 1, 0
        %v348 = vadd.s32 %v338, %v342
        %v349 = vadd.s32 %v341, %v347
        %vm350 = vc.u32 %v348, %v344
        %v351 = vsel %vm350, 1, 0
        %v352 = vadd.s32 %v348, %v344
        %v353 = vadd.s32 %v349, %v351
        %v354 = vadd.s32 %v353, %v343
        %v355 = vadd.s32 %v354, %v345
        %v356 = vmul.u32 %v311, %v302
        %v357 = vadd.s32 %v333, %v352
        %vm358 = vc.u32 %v333, %v352
        %v359 = vadd.s32 %v355, 1
        %v360 = vsel %vm358, %v359, %v355
        %v361 = vadd.s32 %v356, %v360
        %v362 = vadd.s32 %v361, 536870912
        %v363 = vshrl.u32 %v362, 30
        %v364 = vshll.u32 %v363, 30
        %v365 = vsub.s32 %v361, %v364
        %vm366 = vcmp.lt.s32.totalorder %v365, 0
        %v367 = vsub.s32 0, %v365
        %v368 = vsel %vm366, %v367, %v365
        %v369 = vclz %v368
        %v370 = vsub.s32 %v369, 2
        %vm371 = vcmp.gt.s32.totalorder 0, %v370
        %v372 = vsel %vm371, 0, %v370
        %v373 = vsub.s32 32, %v372
        %v374 = vshll.u32 %v365, %v372
        %v375 = vshrl.u32 %v357, %v373
        %v376 = vor.u32 %v374, %v375
        %v377 = vsub.s32 4294967266, %v372
        %v378 = vadd.s32 %v377, 127
        %v379 = vshll.u32 %v378, 23
        %v380 = vor.u32 4788187, %v379
        %v381 = vand.u32 2147483647, %v380
        %v383 = vcvt.s32.f32 %v376
        %v384 = vmul.f32 %v383, %v381
        %v385 = vxor.u32 %v384, 2147483648
        %v386 = vsel %vm265, %v385, %v384
        %v387 = vsub.s32 4, %v363
        %v388 = vsel %vm265, %v387, %v363
        %v389 = vsel %vm264, %v255, %v386
        %v390 = vsel %vm264, 0, %v388
        %v391 = vmul.f32 %v389, %v389
        %v392 = vmul.f32 %v391, -0.001358992
        %v393 = vadd.f32 %v392, 0.041655596
        %v394 = vmul.f32 %v391, %v393
        %v395 = vadd.f32 %v394, -0.4999988
        %v396 = vmul.f32 %v391, %v395
        %v397 = vadd.f32 1.0, %v396
        %v398 = vmul.f32 %v389, %v389
        %v399 = vmul.f32 %v398, -0.00019511016
        %v400 = vadd.f32 %v399, 0.008332121
        %v401 = vmul.f32 %v398, %v400
        %v402 = vadd.f32 %v401, -0.16666654
        %v403 = vmul.f32 %v398, %v402
        %v404 = vadd.f32 %v403, 1.0
        %v405 = vmul.f32 %v404, %v389
        %vm406 = vweird.f32 %v255
        %v407 = vadd.s32 %v390, 3
        %v408 = vand.u32 %v407, 3
        %vm409 = vcmp.lt.s32.totalorder %v408, 2
        %vm410 = vcmp.eq.s32.totalorder %v408, 0
        %v411 = vxor.u32 %v405, 2147483648
        %v412 = vsel %vm410, %v397, %v411
        %vm413 = vcmp.eq.s32.totalorder %v408, 2
        %v414 = vxor.u32 %v397, 2147483648
        %v415 = vsel %vm413, %v414, %v405
        %v416 = vsel %vm409, %v412, %v415
        %v417 = vsel %vm406, nan, %v416
        %v418 = vand.u32 2147483647, %v256
        %vm419 = vcmp.le.f32.partialorder %v418, 0.7853982
        %vm420 = vcmp.lt.s32.totalorder %v256, 0
        %v421 = vand.u32 %v256, 2139095040
        %v422 = vshrl.u32 %v421, 23
        %v423 = vsub.s32 %v422, 127
        %v424 = vand.u32 2147483647, %v256
        %v425 = vand.u32 %v424, 8388607
        %v426 = vor.u32 %v425, 8388608
        %v427 = vsub.s32 0, %v426
        %v428 = vadd.s32 %v423, 1
        %vm429 = vcmp.gt.s32.totalorder %v428, 0
        %v430 = vsel %vm429, %v428, 0
        %v431 = vshrl.u32 %v430, 5
        %v432 = vand.u32 %v430, 31
        %v433 = vsub.s32 32, %v432
        %v434 = vshrl.u32 683565275, %v433
        %v435 = vshll.u32 683565275, %v432
        %v436 = vshrl.u32 2475754826, %v433
        %v437 = vor.u32 %v435, %v436
        %v438 = vshll.u32 2475754826, %v432
        %v439 = vshrl.u32 2131351028, %v433
        %v440 = vor.u32 %v438, %v439
        %v441 = vshll.u32 2131351028, %v432
        %v442 = vshrl.u32 2102212464, %v433
        %v443 = vor.u32 %v441, %v442
        %v444 = vshll.u32 2102212464, %v432
        %v445 = vshrl.u32 920167782, %v433
        %v446 = vor.u32 %v444, %v445
        %v447 = vshll.u32 920167782, %v432
        %v448 = vshrl.u32 1326507024, %v433
        %v449 = vor.u32 %v447, %v448
        %vm450 = vcmp.lt.s32.totalorder %v431, 1
        %vm451 = vcmp.lt.s32.totalorder %v431, 2
        %vm452 = vcmp.lt.s32.totalorder %v431, 3
        %vm453 = vcmp.lt.s32.totalorder %v431, 4
        %v454 = vsel %vm450, %v434, %v437
        %v455 = vsel %vm453, %v443, 2102212464
        %v456 = vsel %vm452, %v440, %v455
        %v457 = vsel %vm451, %v454, %v456
        %v458 = vsel %vm450, %v437, %v440
        %v459 = vsel %vm453, %v446, 920167782
        %v460 = vsel %vm452, %v443, %v459
        %v461 = vsel %vm451, %v458, %v460
        %v462 = vsel %vm450, %v440, %v443
        %v463 = vsel %vm453, %v449, 1326507024
        %v464 = vsel %vm452, %v446, %v463
        %v465 = vsel %vm451, %v462, %v464
        %v466 = vshll.u32 %v426, 8
        %v467 = vand.u32 %v466, 65535
        %v468 = vshrl.u32 %v466, 16
        %v469 = vand.u32 %v465, 65535
        %v470 = vshrl.u32 %v465, 16
        %v471 = vmul.u32 %v467, %v469
        %v472 = vmul.u32 %v467, %v470
        %v473 = vmul.u32 %v468, %v469
        %v474 = vmul.u32 %v468, %v470
        %v475 = vshll.u32 %v472, 16
        %v476 = vshrl.u32 %v472, 16
        %v477 = vshll.u32 %v473, 16
        %v478 = vshrl.u32 %v473, 16
        %vm479 = vc.u32 %v471, %v475
        %v480 = vsel %vm479, 1, 0
        %v481 = vadd.s32 %v471, %v475
        %v482 = vadd.s32 %v474, %v480
        %vm483 = vc.u32 %v481, %v477
        %v484 = vsel %vm483, 1, 0
        %v485 = vadd.s32 %v481, %v477
        %v486 = vadd.s32 %v482, %v484
        %v487 = vadd.s32 %v486, %v476
        %v488 = vadd.s32 %v487, %v478
        %v489 = vand.u32 %v466, 65535
        %v490 = vshrl.u32 %v466, 16
        %v491 = vand.u32 %v461, 65535
        %v492 = vshrl.u32 %v461, 16
        %v493 = vmul.u32 %v489, %v491
        %v494 = vmul.u32 %v489, %v492
        %v495 = vmul.u32 %v490, %v491
        %v496 = vmul.u32 %v490, %v492
        %v497 = vshll.u32 %v494, 16
        %v498 = vshrl.u32 %v494, 16
        %v499 = vshll.u32 %v495, 16
        %v500 = vshrl.u32 %v495, 16
        %vm501 = vc.u32 %v493, %v497
        %v502 = vsel %vm501, 1, 0
        %v503 = vadd.s32 %v493, %v497
        %v504 = vadd.s32 %v496, %v502
        %vm505 = vc.u32 %v503, %v499
        %v506 = vsel %vm505, 1, 0
        %v507 = vadd.s32 %v503, %v499
        %v508 = vadd.s32 %v504, %v506
        %v509 = vadd.s32 %v508, %v498
        %v510 = vadd.s32 %v509, %v500
        %v511 = vmul.u32 %v466, %v457
        %v512 = vadd.s32 %v488, %v507
        %vm513 = vc.u32 %v488, %v507
        %v514 = vadd.s32 %v510, 1
        %v515 = vsel %vm513, %v514, %v510
        %v516 = vadd.s32 %v511, %v515
        %v517 = vadd.s32 %v516, 536870912
        %v518 = vshrl.u32 %v517, 30
        %v519 = vshll.u32 %v518, 30
        %v520 = vsub.s32 %v516, %v519
        %vm521 = vcmp.lt.s32.totalorder %v520, 0
        %v522 = vsub.s32 0, %v520
        %v523 = vsel %vm521, %v522, %v520
        %v524 = vclz %v523
        %v525 = vsub.s32 %v524, 2
        %vm526 = vcmp.gt.s32.totalorder 0, %v525
        %v527 = vsel %vm526, 0, %v525
        %v528 = vsub.s32 32, %v527
        %v529 = vshll.u32 %v520, %v527
        %v530 = vshrl.u32 %v512, %v528
        %v531 = vor.u32 %v529, %v530
        %v532 = vsub.s32 4294967266, %v527
        %v533 = vadd.s32 %v532, 127
        %v534 = vshll.u32 %v533, 23
        %v535 = vor.u32 4788187, %v534
        %v536 = vand.u32 2147483647, %v535
        %v538 = vcvt.s32.f32 %v531
        %v539 = vmul.f32 %v538, %v536
        %v540 = vxor.u32 %v539, 2147483648
        %v541 = vsel %vm420, %v540, %v539
        %v542 = vsub.s32 4, %v518
        %v543 = vsel %vm420, %v542, %v518
        %v544 = vsel %vm419, %v256, %v541
        %v545 = vsel %vm419, 0, %v543
        %v546 = vmul.f32 %v544, %v544
        %v547 = vmul.f32 %v546, -0.001358992
        %v548 = vadd.f32 %v547, 0.041655596
        %v549 = vmul.f32 %v546, %v548
        %v550 = vadd.f32 %v549, -0.4999988
        %v551 = vmul.f32 %v546, %v550
        %v552 = vadd.f32 1.0, %v551
        %v553 = vmul.f32 %v544, %v544
        %v554 = vmul.f32 %v553, -0.00019511016
        %v555 = vadd.f32 %v554, 0.008332121
        %v556 = vmul.f32 %v553, %v555
        %v557 = vadd.f32 %v556, -0.16666654
        %v558 = vmul.f32 %v553, %v557
        %v559 = vadd.f32 %v558, 1.0
        %v560 = vmul.f32 %v559, %v544
        %vm561 = vweird.f32 %v256
        %v562 = vadd.s32 %v545, 3
        %v563 = vand.u32 %v562, 3
        %vm564 = vcmp.lt.s32.totalorder %v563, 2
        %vm565 = vcmp.eq.s32.totalorder %v563, 0
        %v566 = vxor.u32 %v560, 2147483648
        %v567 = vsel %vm565, %v552, %v566
        %vm568 = vcmp.eq.s32.totalorder %v563, 2
        %v569 = vxor.u32 %v552, 2147483648
        %v570 = vsel %vm568, %v569, %v560
        %v571 = vsel %vm564, %v567, %v570
        %v572 = vsel %vm561, nan, %v571
        %v573 = vand.u32 2147483647, %v257
        %vm574 = vcmp.le.f32.partialorder %v573, 0.7853982
        %vm575 = vcmp.lt.s32.totalorder %v257, 0
        %v576 = vand.u32 %v257, 2139095040
        %v577 = vshrl.u32 %v576, 23
        %v578 = vsub.s32 %v577, 127
        %v579 = vand.u32 2147483647, %v257
        %v580 = vand.u32 %v579, 8388607
        %v581 = vor.u32 %v580, 8388608
        %v582 = vsub.s32 0, %v581
        %v583 = vadd.s32 %v578, 1
        %vm584 = vcmp.gt.s32.totalorder %v583, 0
        %v585 = vsel %vm584, %v583, 0
        %v586 = vshrl.u32 %v585, 5
        %v587 = vand.u32 %v585, 31
        %v588 = vsub.s32 32, %v587
        %v589 = vshrl.u32 683565275, %v588
        %v590 = vshll.u32 683565275, %v587
        %v591 = vshrl.u32 2475754826, %v588
        %v592 = vor.u32 %v590, %v591
        %v593 = vshll.u32 2475754826, %v587
        %v594 = vshrl.u32 2131351028, %v588
        %v595 = vor.u32 %v593, %v594
        %v596 = vshll.u32 2131351028, %v587
        %v597 = vshrl.u32 2102212464, %v588
        %v598 = vor.u32 %v596, %v597
        %v599 = vshll.u32 2102212464, %v587
        %v600 = vshrl.u32 920167782, %v588
        %v601 = vor.u32 %v599, %v600
        %v602 = vshll.u32 920167782, %v587
        %v603 = vshrl.u32 1326507024, %v588
        %v604 = vor.u32 %v602, %v603
        %vm605 = vcmp.lt.s32.totalorder %v586, 1
        %vm606 = vcmp.lt.s32.totalorder %v586, 2
        %vm607 = vcmp.lt.s32.totalorder %v586, 3
        %vm608 = vcmp.lt.s32.totalorder %v586, 4
        %v609 = vsel %vm605, %v589, %v592
        %v610 = vsel %vm608, %v598, 2102212464
        %v611 = vsel %vm607, %v595, %v610
        %v612 = vsel %vm606, %v609, %v611
        %v613 = vsel %vm605, %v592, %v595
        %v614 = vsel %vm608, %v601, 920167782
        %v615 = vsel %vm607, %v598, %v614
        %v616 = vsel %vm606, %v613, %v615
        %v617 = vsel %vm605, %v595, %v598
        %v618 = vsel %vm608, %v604, 1326507024
        %v619 = vsel %vm607, %v601, %v618
        %v620 = vsel %vm606, %v617, %v619
        %v621 = vshll.u32 %v581, 8
        %v622 = vand.u32 %v621, 65535
        %v623 = vshrl.u32 %v621, 16
        %v624 = vand.u32 %v620, 65535
        %v625 = vshrl.u32 %v620, 16
        %v626 = vmul.u32 %v622, %v624
        %v627 = vmul.u32 %v622, %v625
        %v628 = vmul.u32 %v623, %v624
        %v629 = vmul.u32 %v623, %v625
        %v630 = vshll.u32 %v627, 16
        %v631 = vshrl.u32 %v627, 16
        %v632 = vshll.u32 %v628, 16
        %v633 = vshrl.u32 %v628, 16
        %vm634 = vc.u32 %v626, %v630
        %v635 = vsel %vm634, 1, 0
        %v636 = vadd.s32 %v626, %v630
        %v637 = vadd.s32 %v629, %v635
        %vm638 = vc.u32 %v636, %v632
        %v639 = vsel %vm638, 1, 0
        %v640 = vadd.s32 %v636, %v632
        %v641 = vadd.s32 %v637, %v639
        %v642 = vadd.s32 %v641, %v631
        %v643 = vadd.s32 %v642, %v633
        %v644 = vand.u32 %v621, 65535
        %v645 = vshrl.u32 %v621, 16
        %v646 = vand.u32 %v616, 65535
        %v647 = vshrl.u32 %v616, 16
        %v648 = vmul.u32 %v644, %v646
        %v649 = vmul.u32 %v644, %v647
        %v650 = vmul.u32 %v645, %v646
        %v651 = vmul.u32 %v645, %v647
        %v652 = vshll.u32 %v649, 16
        %v653 = vshrl.u32 %v649, 16
        %v654 = vshll.u32 %v650, 16
        %v655 = vshrl.u32 %v650, 16
        %vm656 = vc.u32 %v648, %v652
        %v657 = vsel %vm656, 1, 0
        %v658 = vadd.s32 %v648, %v652
        %v659 = vadd.s32 %v651, %v657
        %vm660 = vc.u32 %v658, %v654
        %v661 = vsel %vm660, 1, 0
        %v662 = vadd.s32 %v658, %v654
        %v663 = vadd.s32 %v659, %v661
        %v664 = vadd.s32 %v663, %v653
        %v665 = vadd.s32 %v664, %v655
        %v666 = vmul.u32 %v621, %v612
        %v667 = vadd.s32 %v643, %v662
        %vm668 = vc.u32 %v643, %v662
        %v669 = vadd.s32 %v665, 1
        %v670 = vsel %vm668, %v669, %v665
        %v671 = vadd.s32 %v666, %v670
        %v672 = vadd.s32 %v671, 536870912
        %v673 = vshrl.u32 %v672, 30
        %v674 = vshll.u32 %v673, 30
        %v675 = vsub.s32 %v671, %v674
        %vm676 = vcmp.lt.s32.totalorder %v675, 0
        %v677 = vsub.s32 0, %v675
        %v678 = vsel %vm676, %v677, %v675
        %v679 = vclz %v678
        %v680 = vsub.s32 %v679, 2
        %vm681 = vcmp.gt.s32.totalorder 0, %v680
        %v682 = vsel %vm681, 0, %v680
        %v683 = vsub.s32 32, %v682
        %v684 = vshll.u32 %v675, %v682
        %v685 = vshrl.u32 %v667, %v683
        %v686 = vor.u32 %v684, %v685
        %v687 = vsub.s32 4294967266, %v682
        %v688 = vadd.s32 %v687, 127
        %v689 = vshll.u32 %v688, 23
        %v690 = vor.u32 4788187, %v689
        %v691 = vand.u32 2147483647, %v690
        %v693 = vcvt.s32.f32 %v686
        %v694 = vmul.f32 %v693, %v691
        %v695 = vxor.u32 %v694, 2147483648
        %v696 = vsel %vm575, %v695, %v694
        %v697 = vsub.s32 4, %v673
        %v698 = vsel %vm575, %v697, %v673
        %v699 = vsel %vm574, %v257, %v696
        %v700 = vsel %vm574, 0, %v698
        %v701 = vmul.f32 %v699, %v699
        %v702 = vmul.f32 %v701, -0.001358992
        %v703 = vadd.f32 %v702, 0.041655596
        %v704 = vmul.f32 %v701, %v703
        %v705 = vadd.f32 %v704, -0.4999988
        %v706 = vmul.f32 %v701, %v705
        %v707 = vadd.f32 1.0, %v706
        %v708 = vmul.f32 %v699, %v699
        %v709 = vmul.f32 %v708, -0.00019511016
        %v710 = vadd.f32 %v709, 0.008332121
        %v711 = vmul.f32 %v708, %v710
        %v712 = vadd.f32 %v711, -0.16666654
        %v713 = vmul.f32 %v708, %v712
        %v714 = vadd.f32 %v713, 1.0
        %v715 = vmul.f32 %v714, %v699
        %vm716 = vweird.f32 %v257
        %v717 = vadd.s32 %v700, 3
        %v718 = vand.u32 %v717, 3
        %vm719 = vcmp.lt.s32.totalorder %v718, 2
        %vm720 = vcmp.eq.s32.totalorder %v718, 0
        %v721 = vxor.u32 %v715, 2147483648
        %v722 = vsel %vm720, %v707, %v721
        %vm723 = vcmp.eq.s32.totalorder %v718, 2
        %v724 = vxor.u32 %v707, 2147483648
        %v725 = vsel %vm723, %v724, %v715
        %v726 = vsel %vm719, %v722, %v725
        %v727 = vsel %vm716, nan, %v726
        %v728 = vand.u32 2147483647, %v258
        %vm729 = vcmp.le.f32.partialorder %v728, 0.7853982
        %vm730 = vcmp.lt.s32.totalorder %v258, 0
        %v731 = vand.u32 %v258, 2139095040
        %v732 = vshrl.u32 %v731, 23
        %v733 = vsub.s32 %v732, 127
        %v734 = vand.u32 2147483647, %v258
        %v735 = vand.u32 %v734, 8388607
        %v736 = vor.u32 %v735, 8388608
        %v737 = vsub.s32 0, %v736
        %v738 = vadd.s32 %v733, 1
        %vm739 = vcmp.gt.s32.totalorder %v738, 0
        %v740 = vsel %vm739, %v738, 0
        %v741 = vshrl.u32 %v740, 5
        %v742 = vand.u32 %v740, 31
        %v743 = vsub.s32 32, %v742
        %v744 = vshrl.u32 683565275, %v743
        %v745 = vshll.u32 683565275, %v742
        %v746 = vshrl.u32 2475754826, %v743
        %v747 = vor.u32 %v745, %v746
        %v748 = vshll.u32 2475754826, %v742
        %v749 = vshrl.u32 2131351028, %v743
        %v750 = vor.u32 %v748, %v749
        %v751 = vshll.u32 2131351028, %v742
        %v752 = vshrl.u32 2102212464, %v743
        %v753 = vor.u32 %v751, %v752
        %v754 = vshll.u32 2102212464, %v742
        %v755 = vshrl.u32 920167782, %v743
        %v756 = vor.u32 %v754, %v755
        %v757 = vshll.u32 920167782, %v742
        %v758 = vshrl.u32 1326507024, %v743
        %v759 = vor.u32 %v757, %v758
        %vm760 = vcmp.lt.s32.totalorder %v741, 1
        %vm761 = vcmp.lt.s32.totalorder %v741, 2
        %vm762 = vcmp.lt.s32.totalorder %v741, 3
        %vm763 = vcmp.lt.s32.totalorder %v741, 4
        %v764 = vsel %vm760, %v744, %v747
        %v765 = vsel %vm763, %v753, 2102212464
        %v766 = vsel %vm762, %v750, %v765
        %v767 = vsel %vm761, %v764, %v766
        %v768 = vsel %vm760, %v747, %v750
        %v769 = vsel %vm763, %v756, 920167782
        %v770 = vsel %vm762, %v753, %v769
        %v771 = vsel %vm761, %v768, %v770
        %v772 = vsel %vm760, %v750, %v753
        %v773 = vsel %vm763, %v759, 1326507024
        %v774 = vsel %vm762, %v756, %v773
        %v775 = vsel %vm761, %v772, %v774
        %v776 = vshll.u32 %v736, 8
        %v777 = vand.u32 %v776, 65535
        %v778 = vshrl.u32 %v776, 16
        %v779 = vand.u32 %v775, 65535
        %v780 = vshrl.u32 %v775, 16
        %v781 = vmul.u32 %v777, %v779
        %v782 = vmul.u32 %v777, %v780
        %v783 = vmul.u32 %v778, %v779
        %v784 = vmul.u32 %v778, %v780
        %v785 = vshll.u32 %v782, 16
        %v786 = vshrl.u32 %v782, 16
        %v787 = vshll.u32 %v783, 16
        %v788 = vshrl.u32 %v783, 16
        %vm789 = vc.u32 %v781, %v785
        %v790 = vsel %vm789, 1, 0
        %v791 = vadd.s32 %v781, %v785
        %v792 = vadd.s32 %v784, %v790
        %vm793 = vc.u32 %v791, %v787
        %v794 = vsel %vm793, 1, 0
        %v795 = vadd.s32 %v791, %v787
        %v796 = vadd.s32 %v792, %v794
        %v797 = vadd.s32 %v796, %v786
        %v798 = vadd.s32 %v797, %v788
        %v799 = vand.u32 %v776, 65535
        %v800 = vshrl.u32 %v776, 16
        %v801 = vand.u32 %v771, 65535
        %v802 = vshrl.u32 %v771, 16
        %v803 = vmul.u32 %v799, %v801
        %v804 = vmul.u32 %v799, %v802
        %v805 = vmul.u32 %v800, %v801
        %v806 = vmul.u32 %v800, %v802
        %v807 = vshll.u32 %v804, 16
        %v808 = vshrl.u32 %v804, 16
        %v809 = vshll.u32 %v805, 16
        %v810 = vshrl.u32 %v805, 16
        %vm811 = vc.u32 %v803, %v807
        %v812 = vsel %vm811, 1, 0
        %v813 = vadd.s32 %v803, %v807
        %v814 = vadd.s32 %v806, %v812
        %vm815 = vc.u32 %v813, %v809
        %v816 = vsel %vm815, 1, 0
        %v817 = vadd.s32 %v813, %v809
        %v818 = vadd.s32 %v814, %v816
        %v819 = vadd.s32 %v818, %v808
        %v820 = vadd.s32 %v819, %v810
        %v821 = vmul.u32 %v776, %v767
        %v822 = vadd.s32 %v798, %v817
        %vm823 = vc.u32 %v798, %v817
        %v824 = vadd.s32 %v820, 1
        %v825 = vsel %vm823, %v824, %v820
        %v826 = vadd.s32 %v821, %v825
        %v827 = vadd.s32 %v826, 536870912
        %v828 = vshrl.u32 %v827, 30
        %v829 = vshll.u32 %v828, 30
        %v830 = vsub.s32 %v826, %v829
        %vm831 = vcmp.lt.s32.totalorder %v830, 0
        %v832 = vsub.s32 0, %v830
        %v833 = vsel %vm831, %v832, %v830
        %v834 = vclz %v833
        %v835 = vsub.s32 %v834, 2
        %vm836 = vcmp.gt.s32.totalorder 0, %v835
        %v837 = vsel %vm836, 0, %v835
        %v838 = vsub.s32 32, %v837
        %v839 = vshll.u32 %v830, %v837
        %v840 = vshrl.u32 %v822, %v838
        %v841 = vor.u32 %v839, %v840
        %v842 = vsub.s32 4294967266, %v837
        %v843 = vadd.s32 %v842, 127
        %v844 = vshll.u32 %v843, 23
        %v845 = vor.u32 4788187, %v844
        %v846 = vand.u32 2147483647, %v845
        %v848 = vcvt.s32.f32 %v841
        %v849 = vmul.f32 %v848, %v846
        %v850 = vxor.u32 %v849, 2147483648
        %v851 = vsel %vm730, %v850, %v849
        %v852 = vsub.s32 4, %v828
        %v853 = vsel %vm730, %v852, %v828
        %v854 = vsel %vm729, %v258, %v851
        %v855 = vsel %vm729, 0, %v853
        %v856 = vmul.f32 %v854, %v854
        %v857 = vmul.f32 %v856, -0.001358992
        %v858 = vadd.f32 %v857, 0.041655596
        %v859 = vmul.f32 %v856, %v858
        %v860 = vadd.f32 %v859, -0.4999988
        %v861 = vmul.f32 %v856, %v860
        %v862 = vadd.f32 1.0, %v861
        %v863 = vmul.f32 %v854, %v854
        %v864 = vmul.f32 %v863, -0.00019511016
        %v865 = vadd.f32 %v864, 0.008332121
        %v866 = vmul.f32 %v863, %v865
        %v867 = vadd.f32 %v866, -0.16666654
        %v868 = vmul.f32 %v863, %v867
        %v869 = vadd.f32 %v868, 1.0
        %v870 = vmul.f32 %v869, %v854
        %vm871 = vweird.f32 %v258
        %v872 = vadd.s32 %v855, 3
        %v873 = vand.u32 %v872, 3
        %vm874 = vcmp.lt.s32.totalorder %v873, 2
        %vm875 = vcmp.eq.s32.totalorder %v873, 0
        %v876 = vxor.u32 %v870, 2147483648
        %v877 = vsel %vm875, %v862, %v876
        %vm878 = vcmp.eq.s32.totalorder %v873, 2
        %v879 = vxor.u32 %v862, 2147483648
        %v880 = vsel %vm878, %v879, %v870
        %v881 = vsel %vm874, %v877, %v880
        %v882 = vsel %vm871, nan, %v881
        %v883 = vand.u32 2147483647, %v259
        %vm884 = vcmp.le.f32.partialorder %v883, 0.7853982
        %vm885 = vcmp.lt.s32.totalorder %v259, 0
        %v886 = vand.u32 %v259, 2139095040
        %v887 = vshrl.u32 %v886, 23
        %v888 = vsub.s32 %v887, 127
        %v889 = vand.u32 2147483647, %v259
        %v890 = vand.u32 %v889, 8388607
        %v891 = vor.u32 %v890, 8388608
        %v892 = vsub.s32 0, %v891
        %v893 = vadd.s32 %v888, 1
        %vm894 = vcmp.gt.s32.totalorder %v893, 0
        %v895 = vsel %vm894, %v893, 0
        %v896 = vshrl.u32 %v895, 5
        %v897 = vand.u32 %v895, 31
        %v898 = vsub.s32 32, %v897
        %v899 = vshrl.u32 683565275, %v898
        %v900 = vshll.u32 683565275, %v897
        %v901 = vshrl.u32 2475754826, %v898
        %v902 = vor.u32 %v900, %v901
        %v903 = vshll.u32 2475754826, %v897
        %v904 = vshrl.u32 2131351028, %v898
        %v905 = vor.u32 %v903, %v904
        %v906 = vshll.u32 2131351028, %v897
        %v907 = vshrl.u32 2102212464, %v898
        %v908 = vor.u32 %v906, %v907
        %v909 = vshll.u32 2102212464, %v897
        %v910 = vshrl.u32 920167782, %v898
        %v911 = vor.u32 %v909, %v910
        %v912 = vshll.u32 920167782, %v897
        %v913 = vshrl.u32 1326507024, %v898
        %v914 = vor.u32 %v912, %v913
        %vm915 = vcmp.lt.s32.totalorder %v896, 1
        %vm916 = vcmp.lt.s32.totalorder %v896, 2
        %vm917 = vcmp.lt.s32.totalorder %v896, 3
        %vm918 = vcmp.lt.s32.totalorder %v896, 4
        %v919 = vsel %vm915, %v899, %v902
        %v920 = vsel %vm918, %v908, 2102212464
        %v921 = vsel %vm917, %v905, %v920
        %v922 = vsel %vm916, %v919, %v921
        %v923 = vsel %vm915, %v902, %v905
        %v924 = vsel %vm918, %v911, 920167782
        %v925 = vsel %vm917, %v908, %v924
        %v926 = vsel %vm916, %v923, %v925
        %v927 = vsel %vm915, %v905, %v908
        %v928 = vsel %vm918, %v914, 1326507024
        %v929 = vsel %vm917, %v911, %v928
        %v930 = vsel %vm916, %v927, %v929
        %v931 = vshll.u32 %v891, 8
        %v932 = vand.u32 %v931, 65535
        %v933 = vshrl.u32 %v931, 16
        %v934 = vand.u32 %v930, 65535
        %v935 = vshrl.u32 %v930, 16
        %v936 = vmul.u32 %v932, %v934
        %v937 = vmul.u32 %v932, %v935
        %v938 = vmul.u32 %v933, %v934
        %v939 = vmul.u32 %v933, %v935
        %v940 = vshll.u32 %v937, 16
        %v941 = vshrl.u32 %v937, 16
        %v942 = vshll.u32 %v938, 16
        %v943 = vshrl.u32 %v938, 16
        %vm944 = vc.u32 %v936, %v940
        %v945 = vsel %vm944, 1, 0
        %v946 = vadd.s32 %v936, %v940
        %v947 = vadd.s32 %v939, %v945
        %vm948 = vc.u32 %v946, %v942
        %v949 = vsel %vm948, 1, 0
        %v950 = vadd.s32 %v946, %v942
        %v951 = vadd.s32 %v947, %v949
        %v952 = vadd.s32 %v951, %v941
        %v953 = vadd.s32 %v952, %v943
        %v954 = vand.u32 %v931, 65535
        %v955 = vshrl.u32 %v931, 16
        %v956 = vand.u32 %v926, 65535
        %v957 = vshrl.u32 %v926, 16
        %v958 = vmul.u32 %v954, %v956
        %v959 = vmul.u32 %v954, %v957
        %v960 = vmul.u32 %v955, %v956
        %v961 = vmul.u32 %v955, %v957
        %v962 = vshll.u32 %v959, 16
        %v963 = vshrl.u32 %v959, 16
        %v964 = vshll.u32 %v960, 16
        %v965 = vshrl.u32 %v960, 16
        %vm966 = vc.u32 %v958, %v962
        %v967 = vsel %vm966, 1, 0
        %v968 = vadd.s32 %v958, %v962
        %v969 = vadd.s32 %v961, %v967
        %vm970 = vc.u32 %v968, %v964
        %v971 = vsel %vm970, 1, 0
        %v972 = vadd.s32 %v968, %v964
        %v973 = vadd.s32 %v969, %v971
        %v974 = vadd.s32 %v973, %v963
        %v975 = vadd.s32 %v974, %v965
        %v976 = vmul.u32 %v931, %v922
        %v977 = vadd.s32 %v953, %v972
        %vm978 = vc.u32 %v953, %v972
        %v979 = vadd.s32 %v975, 1
        %v980 = vsel %vm978, %v979, %v975
        %v981 = vadd.s32 %v976, %v980
        %v982 = vadd.s32 %v981, 536870912
        %v983 = vshrl.u32 %v982, 30
        %v984 = vshll.u32 %v983, 30
        %v985 = vsub.s32 %v981, %v984
        %vm986 = vcmp.lt.s32.totalorder %v985, 0
        %v987 = vsub.s32 0, %v985
        %v988 = vsel %vm986, %v987, %v985
        %v989 = vclz %v988
        %v990 = vsub.s32 %v989, 2
        %vm991 = vcmp.gt.s32.totalorder 0, %v990
        %v992 = vsel %vm991, 0, %v990
        %v993 = vsub.s32 32, %v992
        %v994 = vshll.u32 %v985, %v992
        %v995 = vshrl.u32 %v977, %v993
        %v996 = vor.u32 %v994, %v995
        %v997 = vsub.s32 4294967266, %v992
        %v998 = vadd.s32 %v997, 127
        %v999 = vshll.u32 %v998, 23
        %v1000 = vor.u32 4788187, %v999
        %v1001 = vand.u32 2147483647, %v1000
        %v1003 = vcvt.s32.f32 %v996
        %v1004 = vmul.f32 %v1003, %v1001
        %v1005 = vxor.u32 %v1004, 2147483648
        %v1006 = vsel %vm885, %v1005, %v1004
        %v1007 = vsub.s32 4, %v983
        %v1008 = vsel %vm885, %v1007, %v983
        %v1009 = vsel %vm884, %v259, %v1006
        %v1010 = vsel %vm884, 0, %v1008
        %v1011 = vmul.f32 %v1009, %v1009
        %v1012 = vmul.f32 %v1011, -0.001358992
        %v1013 = vadd.f32 %v1012, 0.041655596
        %v1014 = vmul.f32 %v1011, %v1013
        %v1015 = vadd.f32 %v1014, -0.4999988
        %v1016 = vmul.f32 %v1011, %v1015
        %v1017 = vadd.f32 1.0, %v1016
        %v1018 = vmul.f32 %v1009, %v1009
        %v1019 = vmul.f32 %v1018, -0.00019511016
        %v1020 = vadd.f32 %v1019, 0.008332121
        %v1021 = vmul.f32 %v1018, %v1020
        %v1022 = vadd.f32 %v1021, -0.16666654
        %v1023 = vmul.f32 %v1018, %v1022
        %v1024 = vadd.f32 %v1023, 1.0
        %v1025 = vmul.f32 %v1024, %v1009
        %vm1026 = vweird.f32 %v259
        %v1027 = vadd.s32 %v1010, 3
        %v1028 = vand.u32 %v1027, 3
        %vm1029 = vcmp.lt.s32.totalorder %v1028, 2
        %vm1030 = vcmp.eq.s32.totalorder %v1028, 0
        %v1031 = vxor.u32 %v1025, 2147483648
        %v1032 = vsel %vm1030, %v1017, %v1031
        %vm1033 = vcmp.eq.s32.totalorder %v1028, 2
        %v1034 = vxor.u32 %v1017, 2147483648
        %v1035 = vsel %vm1033, %v1034, %v1025
        %v1036 = vsel %vm1029, %v1032, %v1035
        %v1037 = vsel %vm1026, nan, %v1036
        %v1038 = vand.u32 2147483647, %v260
        %vm1039 = vcmp.le.f32.partialorder %v1038, 0.7853982
        %vm1040 = vcmp.lt.s32.totalorder %v260, 0
        %v1041 = vand.u32 %v260, 2139095040
        %v1042 = vshrl.u32 %v1041, 23
        %v1043 = vsub.s32 %v1042, 127
        %v1044 = vand.u32 2147483647, %v260
        %v1045 = vand.u32 %v1044, 8388607
        %v1046 = vor.u32 %v1045, 8388608
        %v1047 = vsub.s32 0, %v1046
        %v1048 = vadd.s32 %v1043, 1
        %vm1049 = vcmp.gt.s32.totalorder %v1048, 0
        %v1050 = vsel %vm1049, %v1048, 0
        %v1051 = vshrl.u32 %v1050, 5
        %v1052 = vand.u32 %v1050, 31
        %v1053 = vsub.s32 32, %v1052
        %v1054 = vshrl.u32 683565275, %v1053
        %v1055 = vshll.u32 683565275, %v1052
        %v1056 = vshrl.u32 2475754826, %v1053
        %v1057 = vor.u32 %v1055, %v1056
        %v1058 = vshll.u32 2475754826, %v1052
        %v1059 = vshrl.u32 2131351028, %v1053
        %v1060 = vor.u32 %v1058, %v1059
        %v1061 = vshll.u32 2131351028, %v1052
        %v1062 = vshrl.u32 2102212464, %v1053
        %v1063 = vor.u32 %v1061, %v1062
        %v1064 = vshll.u32 2102212464, %v1052
        %v1065 = vshrl.u32 920167782, %v1053
        %v1066 = vor.u32 %v1064, %v1065
        %v1067 = vshll.u32 920167782, %v1052
        %v1068 = vshrl.u32 1326507024, %v1053
        %v1069 = vor.u32 %v1067, %v1068
        %vm1070 = vcmp.lt.s32.totalorder %v1051, 1
        %vm1071 = vcmp.lt.s32.totalorder %v1051, 2
        %vm1072 = vcmp.lt.s32.totalorder %v1051, 3
        %vm1073 = vcmp.lt.s32.totalorder %v1051, 4
        %v1074 = vsel %vm1070, %v1054, %v1057
        %v1075 = vsel %vm1073, %v1063, 2102212464
        %v1076 = vsel %vm1072, %v1060, %v1075
        %v1077 = vsel %vm1071, %v1074, %v1076
        %v1078 = vsel %vm1070, %v1057, %v1060
        %v1079 = vsel %vm1073, %v1066, 920167782
        %v1080 = vsel %vm1072, %v1063, %v1079
        %v1081 = vsel %vm1071, %v1078, %v1080
        %v1082 = vsel %vm1070, %v1060, %v1063
        %v1083 = vsel %vm1073, %v1069, 1326507024
        %v1084 = vsel %vm1072, %v1066, %v1083
        %v1085 = vsel %vm1071, %v1082, %v1084
        %v1086 = vshll.u32 %v1046, 8
        %v1087 = vand.u32 %v1086, 65535
        %v1088 = vshrl.u32 %v1086, 16
        %v1089 = vand.u32 %v1085, 65535
        %v1090 = vshrl.u32 %v1085, 16
        %v1091 = vmul.u32 %v1087, %v1089
        %v1092 = vmul.u32 %v1087, %v1090
        %v1093 = vmul.u32 %v1088, %v1089
        %v1094 = vmul.u32 %v1088, %v1090
        %v1095 = vshll.u32 %v1092, 16
        %v1096 = vshrl.u32 %v1092, 16
        %v1097 = vshll.u32 %v1093, 16
        %v1098 = vshrl.u32 %v1093, 16
        %vm1099 = vc.u32 %v1091, %v1095
        %v1100 = vsel %vm1099, 1, 0
        %v1101 = vadd.s32 %v1091, %v1095
        %v1102 = vadd.s32 %v1094, %v1100
        %vm1103 = vc.u32 %v1101, %v1097
        %v1104 = vsel %vm1103, 1, 0
        %v1105 = vadd.s32 %v1101, %v1097
        %v1106 = vadd.s32 %v1102, %v1104
        %v1107 = vadd.s32 %v1106, %v1096
        %v1108 = vadd.s32 %v1107, %v1098
        %v1109 = vand.u32 %v1086, 65535
        %v1110 = vshrl.u32 %v1086, 16
        %v1111 = vand.u32 %v1081, 65535
        %v1112 = vshrl.u32 %v1081, 16
        %v1113 = vmul.u32 %v1109, %v1111
        %v1114 = vmul.u32 %v1109, %v1112
        %v1115 = vmul.u32 %v1110, %v1111
        %v1116 = vmul.u32 %v1110, %v1112
        %v1117 = vshll.u32 %v1114, 16
        %v1118 = vshrl.u32 %v1114, 16
        %v1119 = vshll.u32 %v1115, 16
        %v1120 = vshrl.u32 %v1115, 16
        %vm1121 = vc.u32 %v1113, %v1117
        %v1122 = vsel %vm1121, 1, 0
        %v1123 = vadd.s32 %v1113, %v1117
        %v1124 = vadd.s32 %v1116, %v1122
        %vm1125 = vc.u32 %v1123, %v1119
        %v1126 = vsel %vm1125, 1, 0
        %v1127 = vadd.s32 %v1123, %v1119
        %v1128 = vadd.s32 %v1124, %v1126
        %v1129 = vadd.s32 %v1128, %v1118
        %v1130 = vadd.s32 %v1129, %v1120
        %v1131 = vmul.u32 %v1086, %v1077
        %v1132 = vadd.s32 %v1108, %v1127
        %vm1133 = vc.u32 %v1108, %v1127
        %v1134 = vadd.s32 %v1130, 1
        %v1135 = vsel %vm1133, %v1134, %v1130
        %v1136 = vadd.s32 %v1131, %v1135
        %v1137 = vadd.s32 %v1136, 536870912
        %v1138 = vshrl.u32 %v1137, 30
        %v1139 = vshll.u32 %v1138, 30
        %v1140 = vsub.s32 %v1136, %v1139
        %vm1141 = vcmp.lt.s32.totalorder %v1140, 0
        %v1142 = vsub.s32 0, %v1140
        %v1143 = vsel %vm1141, %v1142, %v1140
        %v1144 = vclz %v1143
        %v1145 = vsub.s32 %v1144, 2
        %vm1146 = vcmp.gt.s32.totalorder 0, %v1145
        %v1147 = vsel %vm1146, 0, %v1145
        %v1148 = vsub.s32 32, %v1147
        %v1149 = vshll.u32 %v1140, %v1147
        %v1150 = vshrl.u32 %v1132, %v1148
        %v1151 = vor.u32 %v1149, %v1150
        %v1152 = vsub.s32 4294967266, %v1147
        %v1153 = vadd.s32 %v1152, 127
        %v1154 = vshll.u32 %v1153, 23
        %v1155 = vor.u32 4788187, %v1154
        %v1156 = vand.u32 2147483647, %v1155
        %v1158 = vcvt.s32.f32 %v1151
        %v1159 = vmul.f32 %v1158, %v1156
        %v1160 = vxor.u32 %v1159, 2147483648
        %v1161 = vsel %vm1040, %v1160, %v1159
        %v1162 = vsub.s32 4, %v1138
        %v1163 = vsel %vm1040, %v1162, %v1138
        %v1164 = vsel %vm1039, %v260, %v1161
        %v1165 = vsel %vm1039, 0, %v1163
        %v1166 = vmul.f32 %v1164, %v1164
        %v1167 = vmul.f32 %v1166, -0.001358992
        %v1168 = vadd.f32 %v1167, 0.041655596
        %v1169 = vmul.f32 %v1166, %v1168
        %v1170 = vadd.f32 %v1169, -0.4999988
        %v1171 = vmul.f32 %v1166, %v1170
        %v1172 = vadd.f32 1.0, %v1171
        %v1173 = vmul.f32 %v1164, %v1164
        %v1174 = vmul.f32 %v1173, -0.00019511016
        %v1175 = vadd.f32 %v1174, 0.008332121
        %v1176 = vmul.f32 %v1173, %v1175
        %v1177 = vadd.f32 %v1176, -0.16666654
        %v1178 = vmul.f32 %v1173, %v1177
        %v1179 = vadd.f32 %v1178, 1.0
        %v1180 = vmul.f32 %v1179, %v1164
        %vm1181 = vweird.f32 %v260
        %v1182 = vadd.s32 %v1165, 3
        %v1183 = vand.u32 %v1182, 3
        %vm1184 = vcmp.lt.s32.totalorder %v1183, 2
        %vm1185 = vcmp.eq.s32.totalorder %v1183, 0
        %v1186 = vxor.u32 %v1180, 2147483648
        %v1187 = vsel %vm1185, %v1172, %v1186
        %vm1188 = vcmp.eq.s32.totalorder %v1183, 2
        %v1189 = vxor.u32 %v1172, 2147483648
        %v1190 = vsel %vm1188, %v1189, %v1180
        %v1191 = vsel %vm1184, %v1187, %v1190
        %v1192 = vsel %vm1181, nan, %v1191
        %v1193 = vand.u32 2147483647, %v261
        %vm1194 = vcmp.le.f32.partialorder %v1193, 0.7853982
        %vm1195 = vcmp.lt.s32.totalorder %v261, 0
        %v1196 = vand.u32 %v261, 2139095040
        %v1197 = vshrl.u32 %v1196, 23
        %v1198 = vsub.s32 %v1197, 127
        %v1199 = vand.u32 2147483647, %v261
        %v1200 = vand.u32 %v1199, 8388607
        %v1201 = vor.u32 %v1200, 8388608
        %v1202 = vsub.s32 0, %v1201
        %v1203 = vadd.s32 %v1198, 1
        %vm1204 = vcmp.gt.s32.totalorder %v1203, 0
        %v1205 = vsel %vm1204, %v1203, 0
        %v1206 = vshrl.u32 %v1205, 5
        %v1207 = vand.u32 %v1205, 31
        %v1208 = vsub.s32 32, %v1207
        %v1209 = vshrl.u32 683565275, %v1208
        %v1210 = vshll.u32 683565275, %v1207
        %v1211 = vshrl.u32 2475754826, %v1208
        %v1212 = vor.u32 %v1210, %v1211
        %v1213 = vshll.u32 2475754826, %v1207
        %v1214 = vshrl.u32 2131351028, %v1208
        %v1215 = vor.u32 %v1213, %v1214
        %v1216 = vshll.u32 2131351028, %v1207
        %v1217 = vshrl.u32 2102212464, %v1208
        %v1218 = vor.u32 %v1216, %v1217
        %v1219 = vshll.u32 2102212464, %v1207
        %v1220 = vshrl.u32 920167782, %v1208
        %v1221 = vor.u32 %v1219, %v1220
        %v1222 = vshll.u32 920167782, %v1207
        %v1223 = vshrl.u32 1326507024, %v1208
        %v1224 = vor.u32 %v1222, %v1223
        %vm1225 = vcmp.lt.s32.totalorder %v1206, 1
        %vm1226 = vcmp.lt.s32.totalorder %v1206, 2
        %vm1227 = vcmp.lt.s32.totalorder %v1206, 3
        %vm1228 = vcmp.lt.s32.totalorder %v1206, 4
        %v1229 = vsel %vm1225, %v1209, %v1212
        %v1230 = vsel %vm1228, %v1218, 2102212464
        %v1231 = vsel %vm1227, %v1215, %v1230
        %v1232 = vsel %vm1226, %v1229, %v1231
        %v1233 = vsel %vm1225, %v1212, %v1215
        %v1234 = vsel %vm1228, %v1221, 920167782
        %v1235 = vsel %vm1227, %v1218, %v1234
        %v1236 = vsel %vm1226, %v1233, %v1235
        %v1237 = vsel %vm1225, %v1215, %v1218
        %v1238 = vsel %vm1228, %v1224, 1326507024
        %v1239 = vsel %vm1227, %v1221, %v1238
        %v1240 = vsel %vm1226, %v1237, %v1239
        %v1241 = vshll.u32 %v1201, 8
        %v1242 = vand.u32 %v1241, 65535
        %v1243 = vshrl.u32 %v1241, 16
        %v1244 = vand.u32 %v1240, 65535
        %v1245 = vshrl.u32 %v1240, 16
        %v1246 = vmul.u32 %v1242, %v1244
        %v1247 = vmul.u32 %v1242, %v1245
        %v1248 = vmul.u32 %v1243, %v1244
        %v1249 = vmul.u32 %v1243, %v1245
        %v1250 = vshll.u32 %v1247, 16
        %v1251 = vshrl.u32 %v1247, 16
        %v1252 = vshll.u32 %v1248, 16
        %v1253 = vshrl.u32 %v1248, 16
        %vm1254 = vc.u32 %v1246, %v1250
        %v1255 = vsel %vm1254, 1, 0
        %v1256 = vadd.s32 %v1246, %v1250
        %v1257 = vadd.s32 %v1249, %v1255
        %vm1258 = vc.u32 %v1256, %v1252
        %v1259 = vsel %vm1258, 1, 0
        %v1260 = vadd.s32 %v1256, %v1252
        %v1261 = vadd.s32 %v1257, %v1259
        %v1262 = vadd.s32 %v1261, %v1251
        %v1263 = vadd.s32 %v1262, %v1253
        %v1264 = vand.u32 %v1241, 65535
        %v1265 = vshrl.u32 %v1241, 16
        %v1266 = vand.u32 %v1236, 65535
        %v1267 = vshrl.u32 %v1236, 16
        %v1268 = vmul.u32 %v1264, %v1266
        %v1269 = vmul.u32 %v1264, %v1267
        %v1270 = vmul.u32 %v1265, %v1266
        %v1271 = vmul.u32 %v1265, %v1267
        %v1272 = vshll.u32 %v1269, 16
        %v1273 = vshrl.u32 %v1269, 16
        %v1274 = vshll.u32 %v1270, 16
        %v1275 = vshrl.u32 %v1270, 16
        %vm1276 = vc.u32 %v1268, %v1272
        %v1277 = vsel %vm1276, 1, 0
        %v1278 = vadd.s32 %v1268, %v1272
        %v1279 = vadd.s32 %v1271, %v1277
        %vm1280 = vc.u32 %v1278, %v1274
        %v1281 = vsel %vm1280, 1, 0
        %v1282 = vadd.s32 %v1278, %v1274
        %v1283 = vadd.s32 %v1279, %v1281
        %v1284 = vadd.s32 %v1283, %v1273
        %v1285 = vadd.s32 %v1284, %v1275
        %v1286 = vmul.u32 %v1241, %v1232
        %v1287 = vadd.s32 %v1263, %v1282
        %vm1288 = vc.u32 %v1263, %v1282
        %v1289 = vadd.s32 %v1285, 1
        %v1290 = vsel %vm1288, %v1289, %v1285
        %v1291 = vadd.s32 %v1286, %v1290
        %v1292 = vadd.s32 %v1291, 536870912
        %v1293 = vshrl.u32 %v1292, 30
        %v1294 = vshll.u32 %v1293, 30
        %v1295 = vsub.s32 %v1291, %v1294
        %vm1296 = vcmp.lt.s32.totalorder %v1295, 0
        %v1297 = vsub.s32 0, %v1295
        %v1298 = vsel %vm1296, %v1297, %v1295
        %v1299 = vclz %v1298
        %v1300 = vsub.s32 %v1299, 2
        %vm1301 = vcmp.gt.s32.totalorder 0, %v1300
        %v1302 = vsel %vm1301, 0, %v1300
        %v1303 = vsub.s32 32, %v1302
        %v1304 = vshll.u32 %v1295, %v1302
        %v1305 = vshrl.u32 %v1287, %v1303
        %v1306 = vor.u32 %v1304, %v1305
        %v1307 = vsub.s32 4294967266, %v1302
        %v1308 = vadd.s32 %v1307, 127
        %v1309 = vshll.u32 %v1308, 23
        %v1310 = vor.u32 4788187, %v1309
        %v1311 = vand.u32 2147483647, %v1310
        %v1313 = vcvt.s32.f32 %v1306
        %v1314 = vmul.f32 %v1313, %v1311
        %v1315 = vxor.u32 %v1314, 2147483648
        %v1316 = vsel %vm1195, %v1315, %v1314
        %v1317 = vsub.s32 4, %v1293
        %v1318 = vsel %vm1195, %v1317, %v1293
        %v1319 = vsel %vm1194, %v261, %v1316
        %v1320 = vsel %vm1194, 0, %v1318
        %v1321 = vmul.f32 %v1319, %v1319
        %v1322 = vmul.f32 %v1321, -0.001358992
        %v1323 = vadd.f32 %v1322, 0.041655596
        %v1324 = vmul.f32 %v1321, %v1323
        %v1325 = vadd.f32 %v1324, -0.4999988
        %v1326 = vmul.f32 %v1321, %v1325
        %v1327 = vadd.f32 1.0, %v1326
        %v1328 = vmul.f32 %v1319, %v1319
        %v1329 = vmul.f32 %v1328, -0.00019511016
        %v1330 = vadd.f32 %v1329, 0.008332121
        %v1331 = vmul.f32 %v1328, %v1330
        %v1332 = vadd.f32 %v1331, -0.16666654
        %v1333 = vmul.f32 %v1328, %v1332
        %v1334 = vadd.f32 %v1333, 1.0
        %v1335 = vmul.f32 %v1334, %v1319
        %vm1336 = vweird.f32 %v261
        %v1337 = vadd.s32 %v1320, 3
        %v1338 = vand.u32 %v1337, 3
        %vm1339 = vcmp.lt.s32.totalorder %v1338, 2
        %vm1340 = vcmp.eq.s32.totalorder %v1338, 0
        %v1341 = vxor.u32 %v1335, 2147483648
        %v1342 = vsel %vm1340, %v1327, %v1341
        %vm1343 = vcmp.eq.s32.totalorder %v1338, 2
        %v1344 = vxor.u32 %v1327, 2147483648
        %v1345 = vsel %vm1343, %v1344, %v1335
        %v1346 = vsel %vm1339, %v1342, %v1345
        %v1347 = vsel %vm1336, nan, %v1346
        %v1348 = vand.u32 2147483647, %v262
        %vm1349 = vcmp.le.f32.partialorder %v1348, 0.7853982
        %vm1350 = vcmp.lt.s32.totalorder %v262, 0
        %v1351 = vand.u32 %v262, 2139095040
        %v1352 = vshrl.u32 %v1351, 23
        %v1353 = vsub.s32 %v1352, 127
        %v1354 = vand.u32 2147483647, %v262
        %v1355 = vand.u32 %v1354, 8388607
        %v1356 = vor.u32 %v1355, 8388608
        %v1357 = vsub.s32 0, %v1356
        %v1358 = vadd.s32 %v1353, 1
        %vm1359 = vcmp.gt.s32.totalorder %v1358, 0
        %v1360 = vsel %vm1359, %v1358, 0
        %v1361 = vshrl.u32 %v1360, 5
        %v1362 = vand.u32 %v1360, 31
        %v1363 = vsub.s32 32, %v1362
        %v1364 = vshrl.u32 683565275, %v1363
        %v1365 = vshll.u32 683565275, %v1362
        %v1366 = vshrl.u32 2475754826, %v1363
        %v1367 = vor.u32 %v1365, %v1366
        %v1368 = vshll.u32 2475754826, %v1362
        %v1369 = vshrl.u32 2131351028, %v1363
        %v1370 = vor.u32 %v1368, %v1369
        %v1371 = vshll.u32 2131351028, %v1362
        %v1372 = vshrl.u32 2102212464, %v1363
        %v1373 = vor.u32 %v1371, %v1372
        %v1374 = vshll.u32 2102212464, %v1362
        %v1375 = vshrl.u32 920167782, %v1363
        %v1376 = vor.u32 %v1374, %v1375
        %v1377 = vshll.u32 920167782, %v1362
        %v1378 = vshrl.u32 1326507024, %v1363
        %v1379 = vor.u32 %v1377, %v1378
        %vm1380 = vcmp.lt.s32.totalorder %v1361, 1
        %vm1381 = vcmp.lt.s32.totalorder %v1361, 2
        %vm1382 = vcmp.lt.s32.totalorder %v1361, 3
        %vm1383 = vcmp.lt.s32.totalorder %v1361, 4
        %v1384 = vsel %vm1380, %v1364, %v1367
        %v1385 = vsel %vm1383, %v1373, 2102212464
        %v1386 = vsel %vm1382, %v1370, %v1385
        %v1387 = vsel %vm1381, %v1384, %v1386
        %v1388 = vsel %vm1380, %v1367, %v1370
        %v1389 = vsel %vm1383, %v1376, 920167782
        %v1390 = vsel %vm1382, %v1373, %v1389
        %v1391 = vsel %vm1381, %v1388, %v1390
        %v1392 = vsel %vm1380, %v1370, %v1373
        %v1393 = vsel %vm1383, %v1379, 1326507024
        %v1394 = vsel %vm1382, %v1376, %v1393
        %v1395 = vsel %vm1381, %v1392, %v1394
        %v1396 = vshll.u32 %v1356, 8
        %v1397 = vand.u32 %v1396, 65535
        %v1398 = vshrl.u32 %v1396, 16
        %v1399 = vand.u32 %v1395, 65535
        %v1400 = vshrl.u32 %v1395, 16
        %v1401 = vmul.u32 %v1397, %v1399
        %v1402 = vmul.u32 %v1397, %v1400
        %v1403 = vmul.u32 %v1398, %v1399
        %v1404 = vmul.u32 %v1398, %v1400
        %v1405 = vshll.u32 %v1402, 16
        %v1406 = vshrl.u32 %v1402, 16
        %v1407 = vshll.u32 %v1403, 16
        %v1408 = vshrl.u32 %v1403, 16
        %vm1409 = vc.u32 %v1401, %v1405
        %v1410 = vsel %vm1409, 1, 0
        %v1411 = vadd.s32 %v1401, %v1405
        %v1412 = vadd.s32 %v1404, %v1410
        %vm1413 = vc.u32 %v1411, %v1407
        %v1414 = vsel %vm1413, 1, 0
        %v1415 = vadd.s32 %v1411, %v1407
        %v1416 = vadd.s32 %v1412, %v1414
        %v1417 = vadd.s32 %v1416, %v1406
        %v1418 = vadd.s32 %v1417, %v1408
        %v1419 = vand.u32 %v1396, 65535
        %v1420 = vshrl.u32 %v1396, 16
        %v1421 = vand.u32 %v1391, 65535
        %v1422 = vshrl.u32 %v1391, 16
        %v1423 = vmul.u32 %v1419, %v1421
        %v1424 = vmul.u32 %v1419, %v1422
        %v1425 = vmul.u32 %v1420, %v1421
        %v1426 = vmul.u32 %v1420, %v1422
        %v1427 = vshll.u32 %v1424, 16
        %v1428 = vshrl.u32 %v1424, 16
        %v1429 = vshll.u32 %v1425, 16
        %v1430 = vshrl.u32 %v1425, 16
        %vm1431 = vc.u32 %v1423, %v1427
        %v1432 = vsel %vm1431, 1, 0
        %v1433 = vadd.s32 %v1423, %v1427
        %v1434 = vadd.s32 %v1426, %v1432
        %vm1435 = vc.u32 %v1433, %v1429
        %v1436 = vsel %vm1435, 1, 0
        %v1437 = vadd.s32 %v1433, %v1429
        %v1438 = vadd.s32 %v1434, %v1436
        %v1439 = vadd.s32 %v1438, %v1428
        %v1440 = vadd.s32 %v1439, %v1430
        %v1441 = vmul.u32 %v1396, %v1387
        %v1442 = vadd.s32 %v1418, %v1437
        %vm1443 = vc.u32 %v1418, %v1437
        %v1444 = vadd.s32 %v1440, 1
        %v1445 = vsel %vm1443, %v1444, %v1440
        %v1446 = vadd.s32 %v1441, %v1445
        %v1447 = vadd.s32 %v1446, 536870912
        %v1448 = vshrl.u32 %v1447, 30
        %v1449 = vshll.u32 %v1448, 30
        %v1450 = vsub.s32 %v1446, %v1449
        %vm1451 = vcmp.lt.s32.totalorder %v1450, 0
        %v1452 = vsub.s32 0, %v1450
        %v1453 = vsel %vm1451, %v1452, %v1450
        %v1454 = vclz %v1453
        %v1455 = vsub.s32 %v1454, 2
        %vm1456 = vcmp.gt.s32.totalorder 0, %v1455
        %v1457 = vsel %vm1456, 0, %v1455
        %v1458 = vsub.s32 32, %v1457
        %v1459 = vshll.u32 %v1450, %v1457
        %v1460 = vshrl.u32 %v1442, %v1458
        %v1461 = vor.u32 %v1459, %v1460
        %v1462 = vsub.s32 4294967266, %v1457
        %v1463 = vadd.s32 %v1462, 127
        %v1464 = vshll.u32 %v1463, 23
        %v1465 = vor.u32 4788187, %v1464
        %v1466 = vand.u32 2147483647, %v1465
        %v1468 = vcvt.s32.f32 %v1461
        %v1469 = vmul.f32 %v1468, %v1466
        %v1470 = vxor.u32 %v1469, 2147483648
        %v1471 = vsel %vm1350, %v1470, %v1469
        %v1472 = vsub.s32 4, %v1448
        %v1473 = vsel %vm1350, %v1472, %v1448
        %v1474 = vsel %vm1349, %v262, %v1471
        %v1475 = vsel %vm1349, 0, %v1473
        %v1476 = vmul.f32 %v1474, %v1474
        %v1477 = vmul.f32 %v1476, -0.001358992
        %v1478 = vadd.f32 %v1477, 0.041655596
        %v1479 = vmul.f32 %v1476, %v1478
        %v1480 = vadd.f32 %v1479, -0.4999988
        %v1481 = vmul.f32 %v1476, %v1480
        %v1482 = vadd.f32 1.0, %v1481
        %v1483 = vmul.f32 %v1474, %v1474
        %v1484 = vmul.f32 %v1483, -0.00019511016
        %v1485 = vadd.f32 %v1484, 0.008332121
        %v1486 = vmul.f32 %v1483, %v1485
        %v1487 = vadd.f32 %v1486, -0.16666654
        %v1488 = vmul.f32 %v1483, %v1487
        %v1489 = vadd.f32 %v1488, 1.0
        %v1490 = vmul.f32 %v1489, %v1474
        %vm1491 = vweird.f32 %v262
        %v1492 = vadd.s32 %v1475, 3
        %v1493 = vand.u32 %v1492, 3
        %vm1494 = vcmp.lt.s32.totalorder %v1493, 2
        %vm1495 = vcmp.eq.s32.totalorder %v1493, 0
        %v1496 = vxor.u32 %v1490, 2147483648
        %v1497 = vsel %vm1495, %v1482, %v1496
        %vm1498 = vcmp.eq.s32.totalorder %v1493, 2
        %v1499 = vxor.u32 %v1482, 2147483648
        %v1500 = vsel %vm1498, %v1499, %v1490
        %v1501 = vsel %vm1494, %v1497, %v1500
        %v1502 = vsel %vm1491, nan, %v1501
        %vm1503 = vcmask 523264
        %1504 = vst.msk [vmem:[%s188] sm:$0xff] %vm1503, %v417
        %1505 = vst.msk [vmem:[%s188 + $0x8] sm:$0xff] %vm1503, %v572
        %1506 = vst.msk [vmem:[%s188 + $0x10] sm:$0xff] %vm1503, %v727
        %1507 = vst.msk [vmem:[%s188 + $0x18] sm:$0xff] %vm1503, %v882
        %1508 = vst.msk [vmem:[%s188 + $0x20] sm:$0xff] %vm1503, %v1037
        %1509 = vst.msk [vmem:[%s188 + $0x28] sm:$0xff] %vm1503, %v1192
        %1510 = vst.msk [vmem:[%s188 + $0x30] sm:$0xff] %vm1503, %v1347
        %1511 = vst.msk [vmem:[%s188 + $0x38] sm:$0xff] %vm1503, %v1502
        %1520 = vrot.lane.b32.xlu0 %v417, 64
        %v1521 = vpop.permute.xlu0 %1520
        %1522 = vrot.lane.b32.xlu0 %v572, 64
        %v1523 = vpop.permute.xlu0 %1522
        %1524 = vrot.lane.b32.xlu0 %v727, 64
        %v1525 = vpop.permute.xlu0 %1524
        %1526 = vrot.lane.b32.xlu0 %v882, 64
        %v1527 = vpop.permute.xlu0 %1526
        %1528 = vrot.lane.b32.xlu0 %v1037, 64
        %v1529 = vpop.permute.xlu0 %1528
        %1530 = vrot.lane.b32.xlu0 %v1192, 64
        %v1531 = vpop.permute.xlu0 %1530
        %1532 = vrot.lane.b32.xlu0 %v1347, 64
        %v1533 = vpop.permute.xlu0 %1532
        %1534 = vrot.lane.b32.xlu0 %v1502, 64
        %v1535 = vpop.permute.xlu0 %1534
        %1544 = vst.msk [vmem:[%s194] sm:$0xff] %vm1503, %v1521
        %1545 = vst.msk [vmem:[%s194 + $0x8] sm:$0xff] %vm1503, %v1523
        %1546 = vst.msk [vmem:[%s194 + $0x10] sm:$0xff] %vm1503, %v1525
        %1547 = vst.msk [vmem:[%s194 + $0x18] sm:$0xff] %vm1503, %v1527
        %1548 = vst.msk [vmem:[%s194 + $0x20] sm:$0xff] %vm1503, %v1529
        %1549 = vst.msk [vmem:[%s194 + $0x28] sm:$0xff] %vm1503, %v1531
        %1550 = vst.msk [vmem:[%s194 + $0x30] sm:$0xff] %vm1503, %v1533
        %1551 = vst.msk [vmem:[%s194 + $0x38] sm:$0xff] %vm1503, %v1535
        %s1552 = smul.u32 8, %s17
        %p1553 = scmp.lt.s32.totalorder %s1552, 15
        %s1554 = scalar_select %p1553, %s1552, 15
        %s1555 = smul.addr %s1554, 8
        %s1556 = scalar_lea.vmem %s2, %s1555
        %s1557 = smul.u32 8, %s17
        %p1558 = scmp.lt.s32.totalorder %s1557, 15
        %s1559 = scalar_select %p1558, %s1557, 15
        %s1560 = smul.addr %s1559, 8
        %s1561 = scalar_lea.vmem %s3, %s1560
        // Predicated region
        $region37: #{tpu_custom_call.1} parent=27 // pred_check
          %p1562 = pneg %p77
        $region38: #{tpu_custom_call.1} parent=27 // pred_check_branch
          %1564 = sbr.rel (%p1562) target = $region40
        $region39: #{tpu_custom_call.1} parent=27 // pred_region
          %s1565 = smul.u32 8, %s17
        $region40: #{tpu_custom_call.1} parent=27 // pred_fallthru
          _
        // Predicated region
        $region41: #{tpu_custom_call.1} parent=27 // pred_check
          %p1566 = pneg %p103
        $region42: #{tpu_custom_call.1} parent=27 // pred_check_branch
          %1568 = sbr.rel (%p1566) target = $region44
        $region43: #{tpu_custom_call.1} parent=27 // pred_region
          %s1569 = smul.u32 8, %s17
        $region44: #{tpu_custom_call.1} parent=27 // pred_fallthru
          _
      $region28: #{tpu_custom_call.1} parent=5 // pred_fallthru
        _
      %p1570 = scmp.le.s32.totalorder 2, %s12
      // Predicated region
      $region45: #{tpu_custom_call.1} parent=5 // pred_check
        %p1571 = pneg %p1570
      $region46: #{tpu_custom_call.1} parent=5 // pred_check_branch
        %1573 = sbr.rel (%p1571) target = $region48
      $region47: #{tpu_custom_call.1} parent=5 // pred_region
        %s1574 = ssub.s32 %s12, 2
        // Predicated region
        $region49: #{tpu_custom_call.1} parent=47 // pred_check
          %p1575 = pneg %p83
        $region50: #{tpu_custom_call.1} parent=47 // pred_check_branch
          %1577 = sbr.rel (%p1575) target = $region52
        $region51: #{tpu_custom_call.1} parent=47 // pred_region
          %s1578 = smul.u32 8, %s18
          %p1579 = scmp.lt.s32.totalorder %s1578, 15
          %s1580 = scalar_select %p1579, %s1578, 15
          %s1581 = smul.addr %s1580, 8
          %s1582 = scalar_lea.vmem %s2, %s1581
        $region52: #{tpu_custom_call.1} parent=47 // pred_fallthru
          _
        // Predicated region
        $region53: #{tpu_custom_call.1} parent=47 // pred_check
          %p1583 = pneg %p109
        $region54: #{tpu_custom_call.1} parent=47 // pred_check_branch
          %1585 = sbr.rel (%p1583) target = $region56
        $region55: #{tpu_custom_call.1} parent=47 // pred_region
          %s1586 = smul.u32 8, %s18
          %p1587 = scmp.lt.s32.totalorder %s1586, 15
          %s1588 = scalar_select %p1587, %s1586, 15
          %s1589 = smul.addr %s1588, 8
          %s1590 = scalar_lea.vmem %s3, %s1589
        $region56: #{tpu_custom_call.1} parent=47 // pred_fallthru
          _
      $region48: #{tpu_custom_call.1} parent=5 // pred_fallthru
        _
    $region6: #{tpu_custom_call.1} parent=1 // loop_footer
      %s16 = sadd.s32 1, %s12
    $region7: #{tpu_custom_call.1} parent=1 // loop_footer_branch
      %11 = sbr.rel target = $region3
    $region8: #{tpu_custom_call.1} parent=1 // loop_exit
      _
    %1591 = vsyncpa [#allocation3], 1
    %s1592 = scalar_lea.sflag [#allocation3], 1
    %1593 = vsyncpa %s1592, 1
    %1594 = vsyncpa [#allocation5], 1

</llo_original>
